<compile_context>
chip_gen: v7x
topology: tpu7x:2x2x1
jax: 0.10.0
libtpu: 0.0.40
codegen_flags: <defaults>
</compile_context>

<pallas_src>
import math
import functools

import jax
import jax.numpy as jnp
from jax import lax
from jax.experimental import pallas as pl
from jax.experimental.pallas import tpu as pltpu


def _softmax_lastdim(x):
    m = jnp.max(x, axis=-1, keepdims=True)
    e = jnp.exp(x - m)
    return e * pl.reciprocal(jnp.sum(e, axis=-1, keepdims=True), approx=False)


def _proto_attn_kernel(hs_ref, q1s_ref, bias1_ref, bias2_ref,
                       w_hs_ref, b_hs_ref, w_pf_ref, b_pf_ref,
                       out_ref, *, dim):
    # ---- fused hs projections: [K1 | V1 | Q/sqrt(P)] on the (M, D) slab ----
    kvq = jnp.dot(hs_ref[...], w_hs_ref[...],
                  preferred_element_type=jnp.float32) + b_hs_ref[...]   # (M, 3D)
    k1 = kvq[:, 0:dim]                                                  # (M, D)
    v1 = kvq[:, dim:2 * dim]                                            # (M, D)
    q = kvq[:, 2 * dim:]                                                # (M, D)

    # ---- stage 1: prototypes attend over tokens (one (R,D)x(M,D)^T matmul) --
    # q1s rows already carry 1/sqrt(lens[b]); bias1 = pad-mask + block-diag.
    s1 = lax.dot_general(q1s_ref[0], k1, (((1,), (1,)), ((), ())),
                         preferred_element_type=jnp.float32)            # (R, M)
    a1 = _softmax_lastdim(s1 + bias1_ref[0])
    pf2 = jnp.dot(a1, v1, preferred_element_type=jnp.float32)           # (R, D)

    # ---- stage 2: tokens attend over updated prototypes; fused [K | V] -----
    kv = jnp.dot(pf2, w_pf_ref[...],
                 preferred_element_type=jnp.float32) + b_pf_ref[...]    # (R, 2D)
    k2 = kv[:, 0:dim]
    v2 = kv[:, dim:]

    s2 = lax.dot_general(q, k2, (((1,), (1,)), ((), ())),
                         preferred_element_type=jnp.float32)            # (M, R)
    a2 = _softmax_lastdim(s2 + bias2_ref[...])
    # D(=32) < 128 lanes => masked stores; negligible at these sizes.
    out_ref[...] = jnp.dot(a2, v2, preferred_element_type=jnp.float32)  # (M, D)


def proto_attn1(hs, proto_feat, lens, mask, params, *, bblk=8):
    """hs: (B,S,D) f32, proto_feat: (P,D) f32, lens: (B,1,1) f32,
       mask: (B,S,1) bool (True == masked/pad)."""
    B, S, D = hs.shape
    P = proto_feat.shape[0]
    bblk = min(bblk, B)
    assert B % bblk == 0, "batch must be divisible by the per-step batch block"
    nblk = B // bblk
    M = bblk * S            # rows of the token slab per grid step
    R = bblk * P            # rows of the prototype slab per grid step
    assert M % 8 == 0 and R % 8 == 0, "sublane dims must be multiples of 8"

    f32 = jnp.float32
    hs_flat = hs.astype(f32).reshape(B * S, D)

    # Hoist the batch-invariant Q1 projection; fold 1/sqrt(lens[b]) into its
    # replicated rows (valid entries have row-batch == col-batch so this equals
    # scaling the key, as the reference does).
    q1 = (proto_feat.astype(f32) @ params["Q1_w"].T.astype(f32)
          + params["Q1_b"].astype(f32))                                  # (P, D)
    inv = lax.rsqrt(lens.reshape(B).astype(f32))                         # (B,)
    q1s = (q1[None, :, :] * inv[:, None, None]).reshape(nblk, R, D)

    # Fused projection matrices (nn.Linear: y = x @ W.T + b).  1/sqrt(P) is
    # folded into the Q projection.
    sp = f32(1.0 / math.sqrt(P))
    w_hs = jnp.concatenate([params["K1_w"].T, params["V1_w"].T,
                            params["Q_w"].T * sp], axis=1).astype(f32)   # (D, 3D)
    b_hs = jnp.concatenate([params["K1_b"], params["V1_b"],
                            params["Q_b"] * sp])[None, :].astype(f32)    # (1, 3D)
    w_pf = jnp.concatenate([params["K_w"].T, params["V_w"].T],
                           axis=1).astype(f32)                           # (D, 2D)
    b_pf = jnp.concatenate([params["K_b"], params["V_b"]])[None, :].astype(f32)

    # Additive biases: block-diagonal structure (kills cross-batch scores) and
    # the padding mask for stage 1; block-diagonal only for stage 2.
    row_b1 = jnp.arange(R) // P                                          # (R,)
    col_b1 = jnp.arange(M) // S                                          # (M,)
    same1 = row_b1[:, None] == col_b1[None, :]                           # (R, M)
    pad_cols = mask.reshape(B, S).reshape(nblk, M)                       # True==pad
    bias1 = jnp.where(same1[None] & ~pad_cols[:, None, :],
                      f32(0.0), f32(-1e9))                               # (nblk,R,M)
    same2 = (jnp.arange(M) // S)[:, None] == (jnp.arange(R) // P)[None, :]
    bias2 = jnp.where(same2, f32(0.0), f32(-1e9))                        # (M, R)

    kernel = functools.partial(_proto_attn_kernel, dim=D)

    out_flat = pl.pallas_call(
        kernel,
        out_shape=jax.ShapeDtypeStruct((B * S, D), f32),
        grid_spec=pltpu.PrefetchScalarGridSpec(
            num_scalar_prefetch=0,
            grid=(nblk,),
            in_specs=[
                pl.BlockSpec((M, D), lambda b: (b, 0)),          # hs slab
                pl.BlockSpec((1, R, D), lambda b: (b, 0, 0)),    # scaled Q1 rows
                pl.BlockSpec((1, R, M), lambda b: (b, 0, 0)),    # stage-1 bias
                pl.BlockSpec((M, R), lambda b: (0, 0)),          # stage-2 bias
                pl.BlockSpec((D, 3 * D), lambda b: (0, 0)),      # fused [K1|V1|Q] W
                pl.BlockSpec((1, 3 * D), lambda b: (0, 0)),      # fused bias
                pl.BlockSpec((D, 2 * D), lambda b: (0, 0)),      # fused [K|V] W
                pl.BlockSpec((1, 2 * D), lambda b: (0, 0)),      # fused bias
            ],
            out_specs=pl.BlockSpec((M, D), lambda b: (b, 0)),
        ),
        compiler_params=pltpu.CompilerParams(
            dimension_semantics=("parallel",)),
    )(hs_flat, q1s, bias1, bias2, w_hs, b_hs, w_pf, b_pf)

    return out_flat.reshape(B, S, D)


def _reference(hs, proto_feat, lens, mask, params):
    """Pure-JAX transcription of the PyTorch forward for validation."""
    def lin(x, w, b):
        return x @ w.T + b
    query = lin(proto_feat, params["Q1_w"], params["Q1_b"])[None]        # (1, P, D)
    key = lin(hs, params["K1_w"], params["K1_b"])                        # (B, S, D)
    value = lin(hs, params["V1_w"], params["V1_b"])                      # (B, S, D)
    scores = jnp.matmul(query, jnp.swapaxes(key, 1, 2) / jnp.sqrt(lens)) # (B, P, S)
    scores = jnp.where(jnp.swapaxes(mask, 1, 2), jnp.float32(-1e9), scores)
    attn = jax.nn.softmax(scores, axis=2)
    pf = jnp.matmul(attn, value)                                         # (B, P, D)
    q = lin(hs, params["Q_w"], params["Q_b"])
    k = lin(pf, params["K_w"], params["K_b"])
    v = lin(pf, params["V_w"], params["V_b"])
    score = jnp.matmul(q, jnp.swapaxes(k, -1, -2)) / math.sqrt(pf.shape[-2])
    attn2 = jax.nn.softmax(score, axis=2)
    return jnp.matmul(attn2, v)


if __name__ == "__main__":
    # batch, seq len, num prototypes, hidden_dim; B=16 so Bblk=8 gives M=128
    # rows per projection matmul and a 2-step grid (both v7x TensorCores busy).
    B, S, P, D = 16, 16, 8, 32

    key = jax.random.PRNGKey(0)
    keys = jax.random.split(key, 20)

    hs = jax.random.normal(keys[0], (B, S, D), jnp.float32)
    proto_feat = jax.random.normal(keys[1], (P, D), jnp.float32)

    valid = jax.random.randint(keys[2], (B,), 4, S + 1).astype(jnp.float32)
    lens = valid.reshape(B, 1, 1)                                 # (B, 1, 1)
    pos = jnp.arange(S, dtype=jnp.float32)[None, :, None]
    mask = pos >= valid[:, None, None]                            # (B, S, 1) bool

    # Deterministic parameter init (Linear-style uniform bounds).
    params = {}
    names = ["Q1", "K1", "V1", "Q", "K", "V"]
    bound = 1.0 / math.sqrt(D)
    for i, n in enumerate(names):
        params[n + "_w"] = jax.random.uniform(keys[3 + 2 * i], (D, D),
                                              jnp.float32, -bound, bound)
        params[n + "_b"] = jax.random.uniform(keys[4 + 2 * i], (D,),
                                              jnp.float32, -bound, bound)

    out = proto_attn1(hs, proto_feat, lens, mask, params, bblk=8)
    out = jax.block_until_ready(out)

    ref = _reference(hs, proto_feat, lens, mask, params)
    assert out.shape == (B, S, D)
    max_err = float(jnp.max(jnp.abs(out - ref)))
    assert jnp.allclose(out, ref, atol=1e-4, rtol=1e-4), f"max_err={max_err}"

    print("KERNEL_OK")
</pallas_src>

<mosaic_0001>
module attributes {stable_mosaic.version = 11 : i64} {
  func.func @_proto_attn_kernel(%arg0: i32, %arg1: memref<128x32xf32, #tpu.memory_space<vmem>>, %arg2: memref<1x64x32xf32, #tpu.memory_space<vmem>>, %arg3: memref<1x64x128xf32, #tpu.memory_space<vmem>>, %arg4: memref<128x64xf32, #tpu.memory_space<vmem>>, %arg5: memref<32x96xf32, #tpu.memory_space<vmem>>, %arg6: memref<1x96xf32, #tpu.memory_space<vmem>>, %arg7: memref<32x64xf32, #tpu.memory_space<vmem>>, %arg8: memref<1x64xf32, #tpu.memory_space<vmem>>, %arg9: memref<128x32xf32, #tpu.memory_space<vmem>>) attributes {dimension_semantics = [#tpu.dimension_semantics<parallel>], iteration_bounds = array<i64: 2>, scalar_prefetch = 0 : i64, scratch_operands = 0 : i64, tpu.core_type = #tpu.core_type<tc>, window_params = [{transform_indices = @transform_0, window_bounds = array<i64: 128, 32>}, {transform_indices = @transform_1, window_bounds = array<i64: 1, 64, 32>}, {transform_indices = @transform_2, window_bounds = array<i64: 1, 64, 128>}, {pipeline_mode = #tpu.pipeline_mode<synchronous>, transform_indices = @transform_3, window_bounds = array<i64: 128, 64>}, {pipeline_mode = #tpu.pipeline_mode<synchronous>, transform_indices = @transform_4, window_bounds = array<i64: 32, 96>}, {pipeline_mode = #tpu.pipeline_mode<synchronous>, transform_indices = @transform_5, window_bounds = array<i64: 1, 96>}, {pipeline_mode = #tpu.pipeline_mode<synchronous>, transform_indices = @transform_6, window_bounds = array<i64: 32, 64>}, {pipeline_mode = #tpu.pipeline_mode<synchronous>, transform_indices = @transform_7, window_bounds = array<i64: 1, 64>}, {transform_indices = @transform_8, window_bounds = array<i64: 128, 32>}]} {
    %c0 = arith.constant 0 : index
    %c0_0 = arith.constant 0 : index
    %0 = vector.load %arg1[%c0, %c0_0] : memref<128x32xf32, #tpu.memory_space<vmem>>, vector<128x32xf32>
    %c0_1 = arith.constant 0 : index
    %c0_2 = arith.constant 0 : index
    %1 = vector.load %arg5[%c0_1, %c0_2] : memref<32x96xf32, #tpu.memory_space<vmem>>, vector<32x96xf32>
    %cst = arith.constant dense<0.000000e+00> : vector<128x96xf32>
    %2 = tpu.matmul %0, %1, %cst {dimension_numbers = #tpu.dot_dimension_numbers<[1], [0], [0], [1], [0, 0, 1, 1], [], []>} : vector<128x32xf32>, vector<32x96xf32>, vector<128x96xf32> -> vector<128x96xf32>
    %c0_3 = arith.constant 0 : index
    %c0_4 = arith.constant 0 : index
    %3 = vector.load %arg6[%c0_3, %c0_4] : memref<1x96xf32, #tpu.memory_space<vmem>>, vector<1x96xf32>
    %4 = vector.broadcast %3 : vector<1x96xf32> to vector<128x96xf32>
    %5 = arith.addf %2, %4 : vector<128x96xf32>
    %6 = vector.extract_strided_slice %5 {offsets = [0, 0], sizes = [128, 32], strides = [1, 1]} : vector<128x96xf32> to vector<128x32xf32>
    %7 = vector.extract_strided_slice %5 {offsets = [0, 32], sizes = [128, 32], strides = [1, 1]} : vector<128x96xf32> to vector<128x32xf32>
    %8 = vector.extract_strided_slice %5 {offsets = [0, 64], sizes = [128, 32], strides = [1, 1]} : vector<128x96xf32> to vector<128x32xf32>
    %c0_5 = arith.constant 0 : index
    %c0_6 = arith.constant 0 : index
    %c0_7 = arith.constant 0 : index
    %9 = vector.load %arg2[%c0_5, %c0_6, %c0_7] : memref<1x64x32xf32, #tpu.memory_space<vmem>>, vector<1x64x32xf32>
    %10 = vector.shape_cast %9 : vector<1x64x32xf32> to vector<64x32xf32>
    %cst_8 = arith.constant dense<0.000000e+00> : vector<64x128xf32>
    %11 = tpu.matmul %10, %6, %cst_8 {dimension_numbers = #tpu.dot_dimension_numbers<[1], [1], [0], [0], [0, 0, 1, 0], [], []>} : vector<64x32xf32>, vector<128x32xf32>, vector<64x128xf32> -> vector<64x128xf32>
    %c0_9 = arith.constant 0 : index
    %c0_10 = arith.constant 0 : index
    %c0_11 = arith.constant 0 : index
    %12 = vector.load %arg3[%c0_9, %c0_10, %c0_11] : memref<1x64x128xf32, #tpu.memory_space<vmem>>, vector<1x64x128xf32>
    %13 = vector.shape_cast %12 : vector<1x64x128xf32> to vector<64x128xf32>
    %14 = arith.addf %11, %13 : vector<64x128xf32>
    %cst_12 = arith.constant dense<0xFF800000> : vector<64xf32>
    %15 = vector.multi_reduction <maximumf>, %14, %cst_12 [1] : vector<64x128xf32> to vector<64xf32>
    %16 = vector.shape_cast %15 : vector<64xf32> to vector<64x1xf32>
    %17 = vector.broadcast %16 : vector<64x1xf32> to vector<64x128xf32>
    %18 = arith.subf %14, %17 : vector<64x128xf32>
    %19 = math.exp %18 : vector<64x128xf32>
    %cst_13 = arith.constant dense<0.000000e+00> : vector<64xf32>
    %20 = vector.multi_reduction <add>, %19, %cst_13 [1] : vector<64x128xf32> to vector<64xf32>
    %21 = vector.shape_cast %20 : vector<64xf32> to vector<64x1xf32>
    %22 = tpu.reciprocal %21 : vector<64x1xf32> -> vector<64x1xf32>
    %23 = vector.broadcast %22 : vector<64x1xf32> to vector<64x128xf32>
    %24 = arith.mulf %19, %23 : vector<64x128xf32>
    %cst_14 = arith.constant dense<0.000000e+00> : vector<64x32xf32>
    %25 = tpu.matmul %24, %7, %cst_14 {dimension_numbers = #tpu.dot_dimension_numbers<[1], [0], [0], [1], [0, 0, 1, 1], [], []>} : vector<64x128xf32>, vector<128x32xf32>, vector<64x32xf32> -> vector<64x32xf32>
    %c0_15 = arith.constant 0 : index
    %c0_16 = arith.constant 0 : index
    %26 = vector.load %arg7[%c0_15, %c0_16] : memref<32x64xf32, #tpu.memory_space<vmem>>, vector<32x64xf32>
    %cst_17 = arith.constant dense<0.000000e+00> : vector<64x64xf32>
    %27 = tpu.matmul %25, %26, %cst_17 {dimension_numbers = #tpu.dot_dimension_numbers<[1], [0], [0], [1], [0, 0, 1, 1], [], []>} : vector<64x32xf32>, vector<32x64xf32>, vector<64x64xf32> -> vector<64x64xf32>
    %c0_18 = arith.constant 0 : index
    %c0_19 = arith.constant 0 : index
    %28 = vector.load %arg8[%c0_18, %c0_19] : memref<1x64xf32, #tpu.memory_space<vmem>>, vector<1x64xf32>
    %29 = vector.broadcast %28 : vector<1x64xf32> to vector<64x64xf32>
    %30 = arith.addf %27, %29 : vector<64x64xf32>
    %31 = vector.extract_strided_slice %30 {offsets = [0, 0], sizes = [64, 32], strides = [1, 1]} : vector<64x64xf32> to vector<64x32xf32>
    %32 = vector.extract_strided_slice %30 {offsets = [0, 32], sizes = [64, 32], strides = [1, 1]} : vector<64x64xf32> to vector<64x32xf32>
    %cst_20 = arith.constant dense<0.000000e+00> : vector<128x64xf32>
    %33 = tpu.matmul %8, %31, %cst_20 {dimension_numbers = #tpu.dot_dimension_numbers<[1], [1], [0], [0], [0, 0, 1, 0], [], []>} : vector<128x32xf32>, vector<64x32xf32>, vector<128x64xf32> -> vector<128x64xf32>
    %c0_21 = arith.constant 0 : index
    %c0_22 = arith.constant 0 : index
    %34 = vector.load %arg4[%c0_21, %c0_22] : memref<128x64xf32, #tpu.memory_space<vmem>>, vector<128x64xf32>
    %35 = arith.addf %33, %34 : vector<128x64xf32>
    %cst_23 = arith.constant dense<0xFF800000> : vector<128xf32>
    %36 = vector.multi_reduction <maximumf>, %35, %cst_23 [1] : vector<128x64xf32> to vector<128xf32>
    %37 = vector.shape_cast %36 : vector<128xf32> to vector<128x1xf32>
    %38 = vector.broadcast %37 : vector<128x1xf32> to vector<128x64xf32>
    %39 = arith.subf %35, %38 : vector<128x64xf32>
    %40 = math.exp %39 : vector<128x64xf32>
    %cst_24 = arith.constant dense<0.000000e+00> : vector<128xf32>
    %41 = vector.multi_reduction <add>, %40, %cst_24 [1] : vector<128x64xf32> to vector<128xf32>
    %42 = vector.shape_cast %41 : vector<128xf32> to vector<128x1xf32>
    %43 = tpu.reciprocal %42 : vector<128x1xf32> -> vector<128x1xf32>
    %44 = vector.broadcast %43 : vector<128x1xf32> to vector<128x64xf32>
    %45 = arith.mulf %40, %44 : vector<128x64xf32>
    %cst_25 = arith.constant dense<0.000000e+00> : vector<128x32xf32>
    %46 = tpu.matmul %45, %32, %cst_25 {dimension_numbers = #tpu.dot_dimension_numbers<[1], [0], [0], [1], [0, 0, 1, 1], [], []>} : vector<128x64xf32>, vector<64x32xf32>, vector<128x32xf32> -> vector<128x32xf32>
    %c0_26 = arith.constant 0 : index
    %c0_27 = arith.constant 0 : index
    %47 = vector.load %arg9[%c0_26, %c0_27] : memref<128x32xf32, #tpu.memory_space<vmem>>, vector<128x32xf32>
    tpu.vector_store %arg9[%c0_26, %c0_27], %46 {strides = array<i32>} : memref<128x32xf32, #tpu.memory_space<vmem>>, vector<128x32xf32>,
    return
  }
  func.func @transform_0(%arg0: i32) -> (i32, i32) {
    %c0_i32 = arith.constant 0 : i32
    %c0_i32_0 = arith.constant 0 : i32
    return %arg0, %c0_i32 : i32, i32
  }
  func.func @transform_1(%arg0: i32) -> (i32, i32, i32) {
    %c0_i32 = arith.constant 0 : i32
    %c0_i32_0 = arith.constant 0 : i32
    %c0_i32_1 = arith.constant 0 : i32
    return %arg0, %c0_i32, %c0_i32_0 : i32, i32, i32
  }
  func.func @transform_2(%arg0: i32) -> (i32, i32, i32) {
    %c0_i32 = arith.constant 0 : i32
    %c0_i32_0 = arith.constant 0 : i32
    %c0_i32_1 = arith.constant 0 : i32
    return %arg0, %c0_i32, %c0_i32_0 : i32, i32, i32
  }
  func.func @transform_3(%arg0: i32) -> (i32, i32) {
    %c0_i32 = arith.constant 0 : i32
    %c0_i32_0 = arith.constant 0 : i32
    %c0_i32_1 = arith.constant 0 : i32
    return %c0_i32, %c0_i32_0 : i32, i32
  }
  func.func @transform_4(%arg0: i32) -> (i32, i32) {
    %c0_i32 = arith.constant 0 : i32
    %c0_i32_0 = arith.constant 0 : i32
    %c0_i32_1 = arith.constant 0 : i32
    return %c0_i32, %c0_i32_0 : i32, i32
  }
  func.func @transform_5(%arg0: i32) -> (i32, i32) {
    %c0_i32 = arith.constant 0 : i32
    %c0_i32_0 = arith.constant 0 : i32
    %c0_i32_1 = arith.constant 0 : i32
    return %c0_i32, %c0_i32_0 : i32, i32
  }
  func.func @transform_6(%arg0: i32) -> (i32, i32) {
    %c0_i32 = arith.constant 0 : i32
    %c0_i32_0 = arith.constant 0 : i32
    %c0_i32_1 = arith.constant 0 : i32
    return %c0_i32, %c0_i32_0 : i32, i32
  }
  func.func @transform_7(%arg0: i32) -> (i32, i32) {
    %c0_i32 = arith.constant 0 : i32
    %c0_i32_0 = arith.constant 0 : i32
    %c0_i32_1 = arith.constant 0 : i32
    return %c0_i32, %c0_i32_0 : i32, i32
  }
  func.func @transform_8(%arg0: i32) -> (i32, i32) {
    %c0_i32 = arith.constant 0 : i32
    %c0_i32_0 = arith.constant 0 : i32
    return %arg0, %c0_i32 : i32, i32
  }
}

</mosaic_0001>

<llo_original>
// kernel: tpu_custom_call.1
$region0: #{tpu_custom_call.1}
  #allocation0 [shape = 'u32[]', space=smem, size = 0x4, offset = 0x4, fixed_abs, tag = 'smem constant byte address 0x4 - core index']
  #allocation1 [shape = 'u32[144,128]{1,0:T(1,128)}', space=vmem, size = 0x12000, scoped, tag = 'internal scratch']
  %s0 = inlined_call_operand.vmem [shape: f32[256,32], index: 0, kind: input, shape index: {}]
  %s1 = inlined_call_operand.vmem [shape: f32[2,64,32], index: 1, kind: input, shape index: {}]
  %s2 = inlined_call_operand.vmem [shape: f32[2,64,128], index: 2, kind: input, shape index: {}]
  %s3 = inlined_call_operand.vmem [shape: f32[128,64], index: 3, kind: input, shape index: {}]
  %s4 = inlined_call_operand.vmem [shape: f32[32,96], index: 4, kind: input, shape index: {}]
  %s5 = inlined_call_operand.vmem [shape: f32[1,96], index: 5, kind: input, shape index: {}]
  %s6 = inlined_call_operand.vmem [shape: f32[32,64], index: 6, kind: input, shape index: {}]
  %s7 = inlined_call_operand.vmem [shape: f32[1,64], index: 7, kind: input, shape index: {}]
  %s8 = inlined_call_operand.vmem [shape: f32[256,32], index: 8, kind: output, shape index: {}]
  %s9 = sld [smem:[#allocation0]]
  $region65: #{tpu_custom_call.1} parent=0
    _
  %s11 = ssub.s32 1, %s9
  %s12 = scalar_select 0, %s11, %s9
  loop: start=0, step=1, limit=4
  $region2: #{tpu_custom_call.1} parent=0 // loop_pre_header
    _
  $region3: #{tpu_custom_call.1} parent=0 // loop_header
    %s14 = sphi 0, %s18
    %p15 = scmp.ge.s32.totalorder %s14, 4
    %s24 = sphi 0, %s26
    %s27 = sphi 0, %s24
    %s28 = sphi 0, %s27
    %s44 = sphi 0, %s28
    %s50 = sphi 0, %s52
    %s53 = sphi 0, %s50
    %s54 = sphi 0, %s53
    %s70 = sphi 0, %s54
    %s76 = sphi 0, %s78
    %s79 = sphi 0, %s76
    %s80 = sphi 0, %s79
    %s96 = sphi 0, %s80
    %s100 = sphi 0, %s100
    %s102 = sphi 0, %s100
    %s103 = sphi 0, %s102
    %s117 = sphi 0, %s103
    %s121 = sphi 0, %s121
    %s123 = sphi 0, %s121
    %s124 = sphi 0, %s123
    %s138 = sphi 0, %s124
    %s142 = sphi 0, %s142
    %s144 = sphi 0, %s142
    %s145 = sphi 0, %s144
    %s159 = sphi 0, %s145
    %s163 = sphi 0, %s163
    %s165 = sphi 0, %s163
    %s166 = sphi 0, %s165
    %s180 = sphi 0, %s166
    %s184 = sphi 0, %s184
    %s186 = sphi 0, %s184
    %s187 = sphi 0, %s186
    %s201 = sphi 0, %s187
    %s207 = sphi 0, %s209
    %s210 = sphi 0, %s207
    %s211 = sphi 0, %s210
    %s227 = sphi 0, %s211
  $region4: #{tpu_custom_call.1} parent=0 // loop_header_branch
    %17 = sbr.rel (%p15) target = $region8
  $region5: #{tpu_custom_call.1} parent=0 // loop_body
    %s19 = ssub.s32 %s14, 1
    %s20 = ssub.s32 %s14, 2
    %s21 = sadd.s32 %s14, 1
    %s22 = ssub.s32 %s14, %s21
    %p23 = scmp.eq.s32.totalorder %s22, 0
    %s25 = sadd.s32 %s24, 1
    %s26 = scalar_select %p23, %s24, %s25
    %p29 = pneg %p23
    %p30 = scmp.eq.s32.totalorder %s14, 1
    %p31 = por %p29, %p30
    %p32 = scmp.ne.s32.totalorder %s24, %s27
    %p33 = scmp.eq.s32.totalorder %s14, 0
    %p34 = por %p32, %p33
    %p35 = scmp.ne.s32.totalorder %s24, %s27
    %p36 = scmp.eq.s32.totalorder %s19, 1
    %p37 = por %p35, %p36
    %p38 = scmp.ne.s32.totalorder %s27, %s28
    %p39 = scmp.eq.s32.totalorder %s19, 0
    %p40 = por %p38, %p39
    %p41 = scmp.ne.s32.totalorder %s27, %s28
    %p42 = scmp.eq.s32.totalorder %s20, 1
    %p43 = por %p41, %p42
    %p45 = scmp.ne.s32.totalorder %s28, %s44
    %p46 = scmp.eq.s32.totalorder %s20, 0
    %p47 = por %p45, %p46
    %s48 = ssub.s32 %s14, %s21
    %p49 = scmp.eq.s32.totalorder %s48, 0
    %s51 = sadd.s32 %s50, 1
    %s52 = scalar_select %p49, %s50, %s51
    %p55 = pneg %p49
    %p56 = scmp.eq.s32.totalorder %s14, 1
    %p57 = por %p55, %p56
    %p58 = scmp.ne.s32.totalorder %s50, %s53
    %p59 = scmp.eq.s32.totalorder %s14, 0
    %p60 = por %p58, %p59
    %p61 = scmp.ne.s32.totalorder %s50, %s53
    %p62 = scmp.eq.s32.totalorder %s19, 1
    %p63 = por %p61, %p62
    %p64 = scmp.ne.s32.totalorder %s53, %s54
    %p65 = scmp.eq.s32.totalorder %s19, 0
    %p66 = por %p64, %p65
    %p67 = scmp.ne.s32.totalorder %s53, %s54
    %p68 = scmp.eq.s32.totalorder %s20, 1
    %p69 = por %p67, %p68
    %p71 = scmp.ne.s32.totalorder %s54, %s70
    %p72 = scmp.eq.s32.totalorder %s20, 0
    %p73 = por %p71, %p72
    %s74 = ssub.s32 %s14, %s21
    %p75 = scmp.eq.s32.totalorder %s74, 0
    %s77 = sadd.s32 %s76, 1
    %s78 = scalar_select %p75, %s76, %s77
    %p81 = pneg %p75
    %p82 = scmp.eq.s32.totalorder %s14, 1
    %p83 = por %p81, %p82
    %p84 = scmp.ne.s32.totalorder %s76, %s79
    %p85 = scmp.eq.s32.totalorder %s14, 0
    %p86 = por %p84, %p85
    %p87 = scmp.ne.s32.totalorder %s76, %s79
    %p88 = scmp.eq.s32.totalorder %s19, 1
    %p89 = por %p87, %p88
    %p90 = scmp.ne.s32.totalorder %s79, %s80
    %p91 = scmp.eq.s32.totalorder %s19, 0
    %p92 = por %p90, %p91
    %p93 = scmp.ne.s32.totalorder %s79, %s80
    %p94 = scmp.eq.s32.totalorder %s20, 1
    %p95 = por %p93, %p94
    %p97 = scmp.ne.s32.totalorder %s80, %s96
    %p98 = scmp.eq.s32.totalorder %s20, 0
    %p99 = por %p97, %p98
    %s101 = sadd.s32 %s100, 1
    %p104 = scmp.eq.s32.totalorder %s14, 1
    %p105 = scmp.ne.s32.totalorder %s100, %s102
    %p106 = scmp.eq.s32.totalorder %s14, 0
    %p107 = por %p105, %p106
    %p108 = scmp.ne.s32.totalorder %s100, %s102
    %p109 = scmp.eq.s32.totalorder %s19, 1
    %p110 = por %p108, %p109
    %p111 = scmp.ne.s32.totalorder %s102, %s103
    %p112 = scmp.eq.s32.totalorder %s19, 0
    %p113 = por %p111, %p112
    %p114 = scmp.ne.s32.totalorder %s102, %s103
    %p115 = scmp.eq.s32.totalorder %s20, 1
    %p116 = por %p114, %p115
    %p118 = scmp.ne.s32.totalorder %s103, %s117
    %p119 = scmp.eq.s32.totalorder %s20, 0
    %p120 = por %p118, %p119
    %s122 = sadd.s32 %s121, 1
    %p125 = scmp.eq.s32.totalorder %s14, 1
    %p126 = scmp.ne.s32.totalorder %s121, %s123
    %p127 = scmp.eq.s32.totalorder %s14, 0
    %p128 = por %p126, %p127
    %p129 = scmp.ne.s32.totalorder %s121, %s123
    %p130 = scmp.eq.s32.totalorder %s19, 1
    %p131 = por %p129, %p130
    %p132 = scmp.ne.s32.totalorder %s123, %s124
    %p133 = scmp.eq.s32.totalorder %s19, 0
    %p134 = por %p132, %p133
    %p135 = scmp.ne.s32.totalorder %s123, %s124
    %p136 = scmp.eq.s32.totalorder %s20, 1
    %p137 = por %p135, %p136
    %p139 = scmp.ne.s32.totalorder %s124, %s138
    %p140 = scmp.eq.s32.totalorder %s20, 0
    %p141 = por %p139, %p140
    %s143 = sadd.s32 %s142, 1
    %p146 = scmp.eq.s32.totalorder %s14, 1
    %p147 = scmp.ne.s32.totalorder %s142, %s144
    %p148 = scmp.eq.s32.totalorder %s14, 0
    %p149 = por %p147, %p148
    %p150 = scmp.ne.s32.totalorder %s142, %s144
    %p151 = scmp.eq.s32.totalorder %s19, 1
    %p152 = por %p150, %p151
    %p153 = scmp.ne.s32.totalorder %s144, %s145
    %p154 = scmp.eq.s32.totalorder %s19, 0
    %p155 = por %p153, %p154
    %p156 = scmp.ne.s32.totalorder %s144, %s145
    %p157 = scmp.eq.s32.totalorder %s20, 1
    %p158 = por %p156, %p157
    %p160 = scmp.ne.s32.totalorder %s145, %s159
    %p161 = scmp.eq.s32.totalorder %s20, 0
    %p162 = por %p160, %p161
    %s164 = sadd.s32 %s163, 1
    %p167 = scmp.eq.s32.totalorder %s14, 1
    %p168 = scmp.ne.s32.totalorder %s163, %s165
    %p169 = scmp.eq.s32.totalorder %s14, 0
    %p170 = por %p168, %p169
    %p171 = scmp.ne.s32.totalorder %s163, %s165
    %p172 = scmp.eq.s32.totalorder %s19, 1
    %p173 = por %p171, %p172
    %p174 = scmp.ne.s32.totalorder %s165, %s166
    %p175 = scmp.eq.s32.totalorder %s19, 0
    %p176 = por %p174, %p175
    %p177 = scmp.ne.s32.totalorder %s165, %s166
    %p178 = scmp.eq.s32.totalorder %s20, 1
    %p179 = por %p177, %p178
    %p181 = scmp.ne.s32.totalorder %s166, %s180
    %p182 = scmp.eq.s32.totalorder %s20, 0
    %p183 = por %p181, %p182
    %s185 = sadd.s32 %s184, 1
    %p188 = scmp.eq.s32.totalorder %s14, 1
    %p189 = scmp.ne.s32.totalorder %s184, %s186
    %p190 = scmp.eq.s32.totalorder %s14, 0
    %p191 = por %p189, %p190
    %p192 = scmp.ne.s32.totalorder %s184, %s186
    %p193 = scmp.eq.s32.totalorder %s19, 1
    %p194 = por %p192, %p193
    %p195 = scmp.ne.s32.totalorder %s186, %s187
    %p196 = scmp.eq.s32.totalorder %s19, 0
    %p197 = por %p195, %p196
    %p198 = scmp.ne.s32.totalorder %s186, %s187
    %p199 = scmp.eq.s32.totalorder %s20, 1
    %p200 = por %p198, %p199
    %p202 = scmp.ne.s32.totalorder %s187, %s201
    %p203 = scmp.eq.s32.totalorder %s20, 0
    %p204 = por %p202, %p203
    %s205 = ssub.s32 %s14, %s21
    %p206 = scmp.eq.s32.totalorder %s205, 0
    %s208 = sadd.s32 %s207, 1
    %s209 = scalar_select %p206, %s207, %s208
    %p212 = pneg %p206
    %p213 = scmp.eq.s32.totalorder %s14, 1
    %p214 = por %p212, %p213
    %p215 = scmp.ne.s32.totalorder %s207, %s210
    %p216 = scmp.eq.s32.totalorder %s14, 0
    %p217 = por %p215, %p216
    %p218 = scmp.ne.s32.totalorder %s207, %s210
    %p219 = scmp.eq.s32.totalorder %s19, 1
    %p220 = por %p218, %p219
    %p221 = scmp.ne.s32.totalorder %s210, %s211
    %p222 = scmp.eq.s32.totalorder %s19, 0
    %p223 = por %p221, %p222
    %p224 = scmp.ne.s32.totalorder %s210, %s211
    %p225 = scmp.eq.s32.totalorder %s20, 1
    %p226 = por %p224, %p225
    %p228 = scmp.ne.s32.totalorder %s211, %s227
    %p229 = scmp.eq.s32.totalorder %s20, 0
    %p230 = por %p228, %p229
    %p231 = scmp.le.s32.totalorder 1, %s14
    %p232 = scmp.lt.s32.totalorder %s14, 3
    %p233 = pnand %p231, %p232
    %p234 = pneg %p233
    // Predicated region
    $region9: #{tpu_custom_call.1} parent=5 // pred_check
      _
    $region10: #{tpu_custom_call.1} parent=5 // pred_check_branch
      %236 = sbr.rel (%p233) target = $region12
    $region11: #{tpu_custom_call.1} parent=5 // pred_region
      %s237 = ssub.s32 %s14, 1
      // Predicated region
      $region13: #{tpu_custom_call.1} parent=11 // pred_check
        %p238 = pneg %p113
      $region14: #{tpu_custom_call.1} parent=11 // pred_check_branch
        %240 = sbr.rel (%p238) target = $region16
      $region15: #{tpu_custom_call.1} parent=11 // pred_region
        _
      $region16: #{tpu_custom_call.1} parent=11 // pred_fallthru
        _
      // Predicated region
      $region17: #{tpu_custom_call.1} parent=11 // pred_check
        %p241 = pneg %p134
      $region18: #{tpu_custom_call.1} parent=11 // pred_check_branch
        %243 = sbr.rel (%p241) target = $region20
      $region19: #{tpu_custom_call.1} parent=11 // pred_region
        _
      $region20: #{tpu_custom_call.1} parent=11 // pred_fallthru
        _
      // Predicated region
      $region21: #{tpu_custom_call.1} parent=11 // pred_check
        %p244 = pneg %p155
      $region22: #{tpu_custom_call.1} parent=11 // pred_check_branch
        %246 = sbr.rel (%p244) target = $region24
      $region23: #{tpu_custom_call.1} parent=11 // pred_region
        _
      $region24: #{tpu_custom_call.1} parent=11 // pred_fallthru
        _
      // Predicated region
      $region25: #{tpu_custom_call.1} parent=11 // pred_check
        %p247 = pneg %p176
      $region26: #{tpu_custom_call.1} parent=11 // pred_check_branch
        %249 = sbr.rel (%p247) target = $region28
      $region27: #{tpu_custom_call.1} parent=11 // pred_region
        _
      $region28: #{tpu_custom_call.1} parent=11 // pred_fallthru
        _
      // Predicated region
      $region29: #{tpu_custom_call.1} parent=11 // pred_check
        %p250 = pneg %p197
      $region30: #{tpu_custom_call.1} parent=11 // pred_check_branch
        %252 = sbr.rel (%p250) target = $region32
      $region31: #{tpu_custom_call.1} parent=11 // pred_region
        _
      $region32: #{tpu_custom_call.1} parent=11 // pred_fallthru
        _
    $region12: #{tpu_custom_call.1} parent=5 // pred_fallthru
      _
    %p253 = scmp.lt.s32.totalorder %s14, 2
    // Predicated region
    $region33: #{tpu_custom_call.1} parent=5 // pred_check
      %p254 = pneg %p253
    $region34: #{tpu_custom_call.1} parent=5 // pred_check_branch
      %256 = sbr.rel (%p254) target = $region36
    $region35: #{tpu_custom_call.1} parent=5 // pred_region
      // Predicated region
      $region37: #{tpu_custom_call.1} parent=35 // pred_check
        %p257 = pneg %p34
      $region38: #{tpu_custom_call.1} parent=35 // pred_check_branch
        %259 = sbr.rel (%p257) target = $region40
      $region39: #{tpu_custom_call.1} parent=35 // pred_region
        %s260 = smul.u32 16, %s14
        %p261 = scmp.lt.s32.totalorder %s260, 31
        %s262 = scalar_select %p261, %s260, 31
        %s263 = smul.addr %s262, 8
        %s264 = scalar_lea.vmem %s0, %s263
        %s265 = smul.u32 16, %s14
      $region40: #{tpu_custom_call.1} parent=35 // pred_fallthru
        _
      // Predicated region
      $region41: #{tpu_custom_call.1} parent=35 // pred_check
        %p266 = pneg %p60
      $region42: #{tpu_custom_call.1} parent=35 // pred_check_branch
        %268 = sbr.rel (%p266) target = $region44
      $region43: #{tpu_custom_call.1} parent=35 // pred_region
        %p269 = scmp.lt.s32.totalorder %s14, 1
        %s270 = scalar_select %p269, %s14, 1
        %s271 = smul.addr %s270, 8
        %s272 = smul.addr %s271, 8
        %s273 = scalar_lea.vmem %s1, %s272
      $region44: #{tpu_custom_call.1} parent=35 // pred_fallthru
        _
      // Predicated region
      $region45: #{tpu_custom_call.1} parent=35 // pred_check
        %p274 = pneg %p86
      $region46: #{tpu_custom_call.1} parent=35 // pred_check_branch
        %276 = sbr.rel (%p274) target = $region48
      $region47: #{tpu_custom_call.1} parent=35 // pred_region
        %p277 = scmp.lt.s32.totalorder %s14, 1
        %s278 = scalar_select %p277, %s14, 1
        %s279 = smul.addr %s278, 8
        %s280 = smul.addr %s279, 8
        %s281 = scalar_lea.vmem %s2, %s280
      $region48: #{tpu_custom_call.1} parent=35 // pred_fallthru
        _
    $region36: #{tpu_custom_call.1} parent=5 // pred_fallthru
      _
    %p282 = scmp.le.s32.totalorder 1, %s14
    %p283 = scmp.lt.s32.totalorder %s14, 3
    %p284 = pnand %p282, %p283
    %p285 = pneg %p284
    // Predicated region
    $region49: #{tpu_custom_call.1} parent=5 // pred_check
      _
    $region50: #{tpu_custom_call.1} parent=5 // pred_check_branch
      %287 = sbr.rel (%p284) target = $region52
    $region51: #{tpu_custom_call.1} parent=5 // pred_region
      %s288 = ssub.s32 %s14, 1
      %s289 = smul.u32 16, %s19
      %p290 = scmp.lt.s32.totalorder %s289, 31
      %s291 = scalar_select %p290, %s289, 31
      %s292 = smul.addr %s291, 8
      %s293 = scalar_lea.vmem %s0, %s292
      %p294 = pneg %p40
      %p295 = pneg %p37
      %p296 = scmp.lt.s32.totalorder %s19, 1
      %s297 = scalar_select %p296, %s19, 1
      %s298 = smul.addr %s297, 8
      %s299 = smul.addr %s298, 8
      %s300 = scalar_lea.vmem %s1, %s299
      %p301 = pneg %p66
      %p302 = pneg %p63
      %p303 = scmp.lt.s32.totalorder %s19, 1
      %s304 = scalar_select %p303, %s19, 1
      %s305 = smul.addr %s304, 8
      %s306 = smul.addr %s305, 8
      %s307 = scalar_lea.vmem %s2, %s306
      %p308 = pneg %p92
      %p309 = pneg %p89
      %p310 = pneg %p113
      %p311 = pneg %p110
      %p312 = pneg %p134
      %p313 = pneg %p131
      %p314 = pneg %p155
      %p315 = pneg %p152
      %p316 = pneg %p176
      %p317 = pneg %p173
      %p318 = pneg %p197
      %p319 = pneg %p194
      %p320 = pneg %p223
      %p321 = pneg %p220
      %s322 = smul.u32 16, %s19
      %p323 = scmp.lt.s32.totalorder %s322, 31
      %s324 = scalar_select %p323, %s322, 31
      %s325 = smul.addr %s324, 8
      %s326 = scalar_lea.vmem %s8, %s325
      %s327 = smul.u32 16, %s19
      %p328 = scmp.lt.s32.totalorder %s327, 31
      %s329 = scalar_select %p328, %s327, 31
      %s330 = smul.addr %s329, 8
      %s331 = scalar_lea.vmem %s0, %s330
      %s332 = smul.u32 16, %s19
      %p333 = scmp.lt.s32.totalorder %s19, 1
      %s334 = scalar_select %p333, %s19, 1
      %s335 = smul.addr %s334, 8
      %s336 = smul.addr %s335, 8
      %s337 = scalar_lea.vmem %s1, %s336
      %p338 = scmp.lt.s32.totalorder %s19, 1
      %s339 = scalar_select %p338, %s19, 1
      %s340 = smul.addr %s339, 8
      %s341 = smul.addr %s340, 8
      %s342 = scalar_lea.vmem %s2, %s341
      %s343 = smul.u32 16, %s19
      %p344 = scmp.lt.s32.totalorder %s343, 31
      %s345 = scalar_select %p344, %s343, 31
      %s346 = smul.addr %s345, 8
      %s347 = scalar_lea.vmem %s8, %s346
      %s348 = smul.u32 16, %s19
      %v349 = vld [vmem:[%s331] sm:$0xff]
      %v350 = vld [vmem:[%s331 + $0x8] sm:$0xff]
      %v351 = vld [vmem:[%s331 + $0x10] sm:$0xff]
      %v352 = vld [vmem:[%s331 + $0x18] sm:$0xff]
      %v353 = vld [vmem:[%s331 + $0x20] sm:$0xff]
      %v354 = vld [vmem:[%s331 + $0x28] sm:$0xff]
      %v355 = vld [vmem:[%s331 + $0x30] sm:$0xff]
      %v356 = vld [vmem:[%s331 + $0x38] sm:$0xff]
      %v357 = vld [vmem:[%s331 + $0x40] sm:$0xff]
      %v358 = vld [vmem:[%s331 + $0x48] sm:$0xff]
      %v359 = vld [vmem:[%s331 + $0x50] sm:$0xff]
      %v360 = vld [vmem:[%s331 + $0x58] sm:$0xff]
      %v361 = vld [vmem:[%s331 + $0x60] sm:$0xff]
      %v362 = vld [vmem:[%s331 + $0x68] sm:$0xff]
      %v363 = vld [vmem:[%s331 + $0x70] sm:$0xff]
      %v364 = vld [vmem:[%s331 + $0x78] sm:$0xff]
      %v365 = vld [vmem:[%s4] sm:$0xff]
      %v366 = vld [vmem:[%s4 + $0x8] sm:$0xff]
      %v367 = vld [vmem:[%s4 + $0x10] sm:$0xff]
      %v368 = vld [vmem:[%s4 + $0x18] sm:$0xff]
      %v369 = vld [vmem:[%s5] sm:$0x1]
      %v371 = vlaneseq
      %v372 = vshrl.u32 %v371, 7
      %v373 = vsub.s32 0, %v372
      %v374 = vrot.slane %v369, %v373
      %vm376 = vcmask 261120
      %v378 = vsel %vm376, %v349, 0
      %v381 = vsel %vm376, %v350, 0
      %v384 = vsel %vm376, %v351, 0
      %v387 = vsel %vm376, %v352, 0
      %v390 = vsel %vm376, %v353, 0
      %v393 = vsel %vm376, %v354, 0
      %v396 = vsel %vm376, %v355, 0
      %v399 = vsel %vm376, %v356, 0
      %v402 = vsel %vm376, %v357, 0
      %v405 = vsel %vm376, %v358, 0
      %v408 = vsel %vm376, %v359, 0
      %v411 = vsel %vm376, %v360, 0
      %v414 = vsel %vm376, %v361, 0
      %v417 = vsel %vm376, %v362, 0
      %v420 = vsel %vm376, %v363, 0
      %v423 = vsel %vm376, %v364, 0
      %425 = vmatprep.subr.mxu0 0.0
      %426 = vmatpush1.msra.mxu0 %v365
      %427 = vmatprep.subr.mxu0 0.0
      %428 = vmatpush1.msra.mxu0 %v366
      %429 = vmatprep.subr.mxu0 0.0
      %430 = vmatpush1.msra.mxu0 %v367
      %431 = vmatprep.subr.mxu0 0.0
      %432 = vmatpush1.msra.mxu0 %v368
      %433 = vmatprep.subr.mxu0 0.0
      %434 = vmatpush1.msra.mxu0 0.0
      %435 = vmatprep.subr.mxu0 0.0
      %436 = vmatpush1.msra.mxu0 0.0
      %437 = vmatprep.subr.mxu0 0.0
      %438 = vmatpush1.msra.mxu0 0.0
      %439 = vmatprep.subr.mxu0 0.0
      %440 = vmatpush1.msra.mxu0 0.0
      %441 = vmatprep.subr.mxu0 0.0
      %442 = vmatpush1.msra.mxu0 0.0
      %443 = vmatprep.subr.mxu0 0.0
      %444 = vmatpush1.msra.mxu0 0.0
      %445 = vmatprep.subr.mxu0 0.0
      %446 = vmatpush1.msra.mxu0 0.0
      %447 = vmatprep.subr.mxu0 0.0
      %448 = vmatpush1.msra.mxu0 0.0
      %449 = vmatprep.subr.mxu0 0.0
      %450 = vmatpush1.msra.mxu0 0.0
      %451 = vmatprep.subr.mxu0 0.0
      %452 = vmatpush1.msra.mxu0 0.0
      %453 = vmatprep.subr.mxu0 0.0
      %454 = vmatpush1.msra.mxu0 0.0
      %455 = vmatprep.subr.mxu0 0.0
      %456 = vmatpush1.msra.mxu0 0.0
      %457 = vmatprep.subr.mxu0 0.0
      %458 = vmatpush1.msra.mxu0 0.0
      %459 = vmatprep.subr.mxu0 0.0
      %460 = vmatpush1.msra.mxu0 0.0
      %461 = vmatprep.subr.mxu0 0.0
      %462 = vmatpush1.msra.mxu0 0.0
      %463 = vmatprep.subr.mxu0 0.0
      %464 = vmatpush1.msra.mxu0 0.0
      %465 = vmatprep.subr.mxu0 0.0
      %466 = vmatpush1.msra.mxu0 0.0
      %467 = vmatprep.subr.mxu0 0.0
      %468 = vmatpush1.msra.mxu0 0.0
      %469 = vmatprep.subr.mxu0 0.0
      %470 = vmatpush1.msra.mxu0 0.0
      %471 = vmatprep.subr.mxu0 0.0
      %472 = vmatpush1.msra.mxu0 0.0
      %473 = vmatprep.subr.mxu0 0.0
      %474 = vmatpush1.msra.mxu0 0.0
      %475 = vmatprep.subr.mxu0 0.0
      %476 = vmatpush1.msra.mxu0 0.0
      %477 = vmatprep.subr.mxu0 0.0
      %478 = vmatpush1.msra.mxu0 0.0
      %479 = vmatprep.subr.mxu0 0.0
      %480 = vmatpush1.msra.mxu0 0.0
      %481 = vmatprep.subr.mxu0 0.0
      %482 = vmatpush1.msra.mxu0 0.0
      %483 = vmatprep.subr.mxu0 0.0
      %484 = vmatpush1.msra.mxu0 0.0
      %485 = vmatprep.subr.mxu0 0.0
      %486 = vmatpush1.msra.mxu0 0.0
      %487 = vmatprep.subr.mxu0 0.0
      %488 = vmatpush1.msra.mxu0 0.0
      %489 = vmatprep.mubr.f32.mxu0 0.0
      %490 = vmatmul.mubr.f32.gmra.mrb[0].mxu0 %v378
      %v491 = vpop.f32.mrb[0].mxu0
      %v492 = vadd.f32 %v374, %v491
      %v493 = vpop.f32.mrb[0].mxu0
      %494 = vmatprep.mubr.f32.mxu0 0.0
      %495 = vmatmul.mubr.f32.gmra.mrb[0].mxu0 %v381
      %v496 = vpop.f32.mrb[0].mxu0
      %v497 = vadd.f32 %v374, %v496
      %v498 = vpop.f32.mrb[0].mxu0
      %499 = vmatprep.mubr.f32.mxu0 0.0
      %500 = vmatmul.mubr.f32.gmra.mrb[0].mxu0 %v384
      %v501 = vpop.f32.mrb[0].mxu0
      %v502 = vadd.f32 %v374, %v501
      %v503 = vpop.f32.mrb[0].mxu0
      %504 = vmatprep.mubr.f32.mxu0 0.0
      %505 = vmatmul.mubr.f32.gmra.mrb[0].mxu0 %v387
      %v506 = vpop.f32.mrb[0].mxu0
      %v507 = vadd.f32 %v374, %v506
      %v508 = vpop.f32.mrb[0].mxu0
      %509 = vmatprep.mubr.f32.mxu0 0.0
      %510 = vmatmul.mubr.f32.gmra.mrb[0].mxu0 %v390
      %v511 = vpop.f32.mrb[0].mxu0
      %v512 = vadd.f32 %v374, %v511
      %v513 = vpop.f32.mrb[0].mxu0
      %514 = vmatprep.mubr.f32.mxu0 0.0
      %515 = vmatmul.mubr.f32.gmra.mrb[0].mxu0 %v393
      %v516 = vpop.f32.mrb[0].mxu0
      %v517 = vadd.f32 %v374, %v516
      %v518 = vpop.f32.mrb[0].mxu0
      %519 = vmatprep.mubr.f32.mxu0 0.0
      %520 = vmatmul.mubr.f32.gmra.mrb[0].mxu0 %v396
      %v521 = vpop.f32.mrb[0].mxu0
      %v522 = vadd.f32 %v374, %v521
      %v523 = vpop.f32.mrb[0].mxu0
      %524 = vmatprep.mubr.f32.mxu0 0.0
      %525 = vmatmul.mubr.f32.gmra.mrb[0].mxu0 %v399
      %v526 = vpop.f32.mrb[0].mxu0
      %v527 = vadd.f32 %v374, %v526
      %v528 = vpop.f32.mrb[0].mxu0
      %529 = vmatprep.mubr.f32.mxu0 0.0
      %530 = vmatmul.mubr.f32.gmra.mrb[0].mxu0 %v402
      %v531 = vpop.f32.mrb[0].mxu0
      %v532 = vadd.f32 %v374, %v531
      %v533 = vpop.f32.mrb[0].mxu0
      %534 = vmatprep.mubr.f32.mxu0 0.0
      %535 = vmatmul.mubr.f32.gmra.mrb[0].mxu0 %v405
      %v536 = vpop.f32.mrb[0].mxu0
      %v537 = vadd.f32 %v374, %v536
      %v538 = vpop.f32.mrb[0].mxu0
      %539 = vmatprep.mubr.f32.mxu0 0.0
      %540 = vmatmul.mubr.f32.gmra.mrb[0].mxu0 %v408
      %v541 = vpop.f32.mrb[0].mxu0
      %v542 = vadd.f32 %v374, %v541
      %v543 = vpop.f32.mrb[0].mxu0
      %544 = vmatprep.mubr.f32.mxu0 0.0
      %545 = vmatmul.mubr.f32.gmra.mrb[0].mxu0 %v411
      %v546 = vpop.f32.mrb[0].mxu0
      %v547 = vadd.f32 %v374, %v546
      %v548 = vpop.f32.mrb[0].mxu0
      %549 = vmatprep.mubr.f32.mxu0 0.0
      %550 = vmatmul.mubr.f32.gmra.mrb[0].mxu0 %v414
      %v551 = vpop.f32.mrb[0].mxu0
      %v552 = vadd.f32 %v374, %v551
      %v553 = vpop.f32.mrb[0].mxu0
      %554 = vmatprep.mubr.f32.mxu0 0.0
      %555 = vmatmul.mubr.f32.gmra.mrb[0].mxu0 %v417
      %v556 = vpop.f32.mrb[0].mxu0
      %v557 = vadd.f32 %v374, %v556
      %v558 = vpop.f32.mrb[0].mxu0
      %559 = vmatprep.mubr.f32.mxu0 0.0
      %560 = vmatmul.mubr.f32.gmra.mrb[0].mxu0 %v420
      %v561 = vpop.f32.mrb[0].mxu0
      %v562 = vadd.f32 %v374, %v561
      %v563 = vpop.f32.mrb[0].mxu0
      %564 = vmatprep.mubr.f32.mxu0 0.0
      %565 = vmatmul.mubr.f32.gmra.mrb[0].mxu0 %v423
      %v566 = vpop.f32.mrb[0].mxu0
      %v567 = vadd.f32 %v374, %v566
      %v568 = vpop.f32.mrb[0].mxu0
      %569 = vdwg.mxu0
      %v570 = vld [vmem:[%s337] sm:$0xff]
      %v571 = vld [vmem:[%s337 + $0x8] sm:$0xff]
      %v572 = vld [vmem:[%s337 + $0x10] sm:$0xff]
      %v573 = vld [vmem:[%s337 + $0x18] sm:$0xff]
      %v574 = vld [vmem:[%s337 + $0x20] sm:$0xff]
      %v575 = vld [vmem:[%s337 + $0x28] sm:$0xff]
      %v576 = vld [vmem:[%s337 + $0x30] sm:$0xff]
      %v577 = vld [vmem:[%s337 + $0x38] sm:$0xff]
      %v578 = vld [vmem:[%s342] sm:$0xff]
      %v579 = vld [vmem:[%s342 + $0x8] sm:$0xff]
      %v580 = vld [vmem:[%s342 + $0x10] sm:$0xff]
      %v581 = vld [vmem:[%s342 + $0x18] sm:$0xff]
      %v582 = vld [vmem:[%s342 + $0x20] sm:$0xff]
      %v583 = vld [vmem:[%s342 + $0x28] sm:$0xff]
      %v584 = vld [vmem:[%s342 + $0x30] sm:$0xff]
      %v585 = vld [vmem:[%s342 + $0x38] sm:$0xff]
      %v587 = vsel %vm376, %v570, 0
      %v590 = vsel %vm376, %v571, 0
      %v593 = vsel %vm376, %v572, 0
      %v596 = vsel %vm376, %v573, 0
      %v599 = vsel %vm376, %v574, 0
      %v602 = vsel %vm376, %v575, 0
      %v605 = vsel %vm376, %v576, 0
      %v608 = vsel %vm376, %v577, 0
      %v611 = vsel %vm376, %v492, 0
      %v614 = vsel %vm376, %v497, 0
      %v617 = vsel %vm376, %v502, 0
      %v620 = vsel %vm376, %v507, 0
      %v623 = vsel %vm376, %v512, 0
      %v626 = vsel %vm376, %v517, 0
      %v629 = vsel %vm376, %v522, 0
      %v632 = vsel %vm376, %v527, 0
      %v635 = vsel %vm376, %v532, 0
      %v638 = vsel %vm376, %v537, 0
      %v641 = vsel %vm376, %v542, 0
      %v644 = vsel %vm376, %v547, 0
      %v647 = vsel %vm376, %v552, 0
      %v650 = vsel %vm376, %v557, 0
      %v653 = vsel %vm376, %v562, 0
      %v656 = vsel %vm376, %v567, 0
      %658 = vmatprep.subr.mxu0 0.0
      %659 = vmatpush1.xpose.msra.mxu0 %v611
      %660 = vmatprep.subr.mxu0 0.0
      %661 = vmatpush1.xpose.msra.mxu0 %v614
      %662 = vmatprep.subr.mxu0 0.0
      %663 = vmatpush1.xpose.msra.mxu0 %v617
      %664 = vmatprep.subr.mxu0 0.0
      %665 = vmatpush1.xpose.msra.mxu0 %v620
      %666 = vmatprep.subr.mxu0 0.0
      %667 = vmatpush1.xpose.msra.mxu0 %v623
      %668 = vmatprep.subr.mxu0 0.0
      %669 = vmatpush1.xpose.msra.mxu0 %v626
      %670 = vmatprep.subr.mxu0 0.0
      %671 = vmatpush1.xpose.msra.mxu0 %v629
      %672 = vmatprep.subr.mxu0 0.0
      %673 = vmatpush1.xpose.msra.mxu0 %v632
      %674 = vmatprep.subr.mxu0 0.0
      %675 = vmatpush1.xpose.msra.mxu0 %v635
      %676 = vmatprep.subr.mxu0 0.0
      %677 = vmatpush1.xpose.msra.mxu0 %v638
      %678 = vmatprep.subr.mxu0 0.0
      %679 = vmatpush1.xpose.msra.mxu0 %v641
      %680 = vmatprep.subr.mxu0 0.0
      %681 = vmatpush1.xpose.msra.mxu0 %v644
      %682 = vmatprep.subr.mxu0 0.0
      %683 = vmatpush1.xpose.msra.mxu0 %v647
      %684 = vmatprep.subr.mxu0 0.0
      %685 = vmatpush1.xpose.msra.mxu0 %v650
      %686 = vmatprep.subr.mxu0 0.0
      %687 = vmatpush1.xpose.msra.mxu0 %v653
      %688 = vmatprep.subr.mxu0 0.0
      %689 = vmatpush1.xpose.msra.mxu0 %v656
      %690 = vmatprep.subr.mxu0 0.0
      %691 = vmatpush1.xpose.msra.mxu0 0.0
      %692 = vmatprep.subr.mxu0 0.0
      %693 = vmatpush1.xpose.msra.mxu0 0.0
      %694 = vmatprep.subr.mxu0 0.0
      %695 = vmatpush1.xpose.msra.mxu0 0.0
      %696 = vmatprep.subr.mxu0 0.0
      %697 = vmatpush1.xpose.msra.mxu0 0.0
      %698 = vmatprep.subr.mxu0 0.0
      %699 = vmatpush1.xpose.msra.mxu0 0.0
      %700 = vmatprep.subr.mxu0 0.0
      %701 = vmatpush1.xpose.msra.mxu0 0.0
      %702 = vmatprep.subr.mxu0 0.0
      %703 = vmatpush1.xpose.msra.mxu0 0.0
      %704 = vmatprep.subr.mxu0 0.0
      %705 = vmatpush1.xpose.msra.mxu0 0.0
      %706 = vmatprep.subr.mxu0 0.0
      %707 = vmatpush1.xpose.msra.mxu0 0.0
      %708 = vmatprep.subr.mxu0 0.0
      %709 = vmatpush1.xpose.msra.mxu0 0.0
      %710 = vmatprep.subr.mxu0 0.0
      %711 = vmatpush1.xpose.msra.mxu0 0.0
      %712 = vmatprep.subr.mxu0 0.0
      %713 = vmatpush1.xpose.msra.mxu0 0.0
      %714 = vmatprep.subr.mxu0 0.0
      %715 = vmatpush1.xpose.msra.mxu0 0.0
      %716 = vmatprep.subr.mxu0 0.0
      %717 = vmatpush1.xpose.msra.mxu0 0.0
      %718 = vmatprep.subr.mxu0 0.0
      %719 = vmatpush1.xpose.msra.mxu0 0.0
      %720 = vmatprep.subr.mxu0 0.0
      %721 = vmatpush1.xpose.msra.mxu0 0.0
      %722 = vmatprep.mubr.f32.mxu0 0.0
      %723 = vmatmul.mubr.f32.gmra.mrb[0].mxu0 %v587
      %v724 = vpop.f32.mrb[0].mxu0
      %v725 = vadd.f32 %v578, %v724
      %v726 = vpop.f32.mrb[0].mxu0
      %727 = vmatprep.mubr.f32.mxu0 0.0
      %728 = vmatmul.mubr.f32.gmra.mrb[0].mxu0 %v590
      %v729 = vpop.f32.mrb[0].mxu0
      %v730 = vadd.f32 %v579, %v729
      %v731 = vpop.f32.mrb[0].mxu0
      %732 = vmatprep.mubr.f32.mxu0 0.0
      %733 = vmatmul.mubr.f32.gmra.mrb[0].mxu0 %v593
      %v734 = vpop.f32.mrb[0].mxu0
      %v735 = vadd.f32 %v580, %v734
      %v736 = vpop.f32.mrb[0].mxu0
      %737 = vmatprep.mubr.f32.mxu0 0.0
      %738 = vmatmul.mubr.f32.gmra.mrb[0].mxu0 %v596
      %v739 = vpop.f32.mrb[0].mxu0
      %v740 = vadd.f32 %v581, %v739
      %v741 = vpop.f32.mrb[0].mxu0
      %742 = vmatprep.mubr.f32.mxu0 0.0
      %743 = vmatmul.mubr.f32.gmra.mrb[0].mxu0 %v599
      %v744 = vpop.f32.mrb[0].mxu0
      %v745 = vadd.f32 %v582, %v744
      %v746 = vpop.f32.mrb[0].mxu0
      %747 = vmatprep.mubr.f32.mxu0 0.0
      %748 = vmatmul.mubr.f32.gmra.mrb[0].mxu0 %v602
      %v749 = vpop.f32.mrb[0].mxu0
      %v750 = vadd.f32 %v583, %v749
      %v751 = vpop.f32.mrb[0].mxu0
      %752 = vmatprep.mubr.f32.mxu0 0.0
      %753 = vmatmul.mubr.f32.gmra.mrb[0].mxu0 %v605
      %v754 = vpop.f32.mrb[0].mxu0
      %v755 = vadd.f32 %v584, %v754
      %v756 = vpop.f32.mrb[0].mxu0
      %757 = vmatprep.mubr.f32.mxu0 0.0
      %758 = vmatmul.mubr.f32.gmra.mrb[0].mxu0 %v608
      %v759 = vpop.f32.mrb[0].mxu0
      %v760 = vadd.f32 %v585, %v759
      %v761 = vpop.f32.mrb[0].mxu0
      %762 = vdwg.mxu0
      %763 = vmax.xlane.f32.xlu0 %v725
      %v764 = vpop.xlane.xlu0 %763
      %765 = vmax.xlane.f32.xlu0 %v730
      %v766 = vpop.xlane.xlu0 %765
      %767 = vmax.xlane.f32.xlu0 %v735
      %v768 = vpop.xlane.xlu0 %767
      %769 = vmax.xlane.f32.xlu0 %v740
      %v770 = vpop.xlane.xlu0 %769
      %771 = vmax.xlane.f32.xlu0 %v745
      %v772 = vpop.xlane.xlu0 %771
      %773 = vmax.xlane.f32.xlu0 %v750
      %v774 = vpop.xlane.xlu0 %773
      %775 = vmax.xlane.f32.xlu0 %v755
      %v776 = vpop.xlane.xlu0 %775
      %777 = vmax.xlane.f32.xlu0 %v760
      %v778 = vpop.xlane.xlu0 %777
      %v779 = vsub.f32 %v725, %v764
      %v780 = vsub.f32 %v730, %v766
      %v781 = vsub.f32 %v735, %v768
      %v782 = vsub.f32 %v740, %v770
      %v783 = vsub.f32 %v745, %v772
      %v784 = vsub.f32 %v750, %v774
      %v785 = vsub.f32 %v755, %v776
      %v786 = vsub.f32 %v760, %v778
      %v787 = vmul.f32 %v779, 1.442695
      %v788 = vpow.pop %v787
      %v789 = vmul.f32 %v780, 1.442695
      %v790 = vpow.pop %v789
      %v791 = vmul.f32 %v781, 1.442695
      %v792 = vpow.pop %v791
      %v793 = vmul.f32 %v782, 1.442695
      %v794 = vpow.pop %v793
      %v795 = vmul.f32 %v783, 1.442695
      %v796 = vpow.pop %v795
      %v797 = vmul.f32 %v784, 1.442695
      %v798 = vpow.pop %v797
      %v799 = vmul.f32 %v785, 1.442695
      %v800 = vpow.pop %v799
      %v801 = vmul.f32 %v786, 1.442695
      %v802 = vpow.pop %v801
      %803 = vadd.xlane.f32.xlu0 %v788
      %v804 = vpop.xlane.xlu0 %803
      %805 = vadd.xlane.f32.xlu0 %v790
      %v806 = vpop.xlane.xlu0 %805
      %807 = vadd.xlane.f32.xlu0 %v792
      %v808 = vpop.xlane.xlu0 %807
      %809 = vadd.xlane.f32.xlu0 %v794
      %v810 = vpop.xlane.xlu0 %809
      %811 = vadd.xlane.f32.xlu0 %v796
      %v812 = vpop.xlane.xlu0 %811
      %813 = vadd.xlane.f32.xlu0 %v798
      %v814 = vpop.xlane.xlu0 %813
      %815 = vadd.xlane.f32.xlu0 %v800
      %v816 = vpop.xlane.xlu0 %815
      %817 = vadd.xlane.f32.xlu0 %v802
      %v818 = vpop.xlane.xlu0 %817
      %v819 = vrcp.pop %v804
      %v820 = vrcp.pop %v806
      %v821 = vrcp.pop %v808
      %v822 = vrcp.pop %v810
      %v823 = vrcp.pop %v812
      %v824 = vrcp.pop %v814
      %v825 = vrcp.pop %v816
      %v826 = vrcp.pop %v818
      %v827 = vmul.f32 %v788, %v819
      %v828 = vmul.f32 %v790, %v820
      %v829 = vmul.f32 %v792, %v821
      %v830 = vmul.f32 %v794, %v822
      %v831 = vmul.f32 %v796, %v823
      %v832 = vmul.f32 %v798, %v824
      %v833 = vmul.f32 %v800, %v825
      %v834 = vmul.f32 %v802, %v826
      %835 = vrot.lane.b32.xlu0 %v492, 96
      %v836 = vpop.permute.xlu0 %835
      %837 = vrot.lane.b32.xlu0 %v497, 96
      %v838 = vpop.permute.xlu0 %837
      %839 = vrot.lane.b32.xlu0 %v502, 96
      %v840 = vpop.permute.xlu0 %839
      %841 = vrot.lane.b32.xlu0 %v507, 96
      %v842 = vpop.permute.xlu0 %841
      %843 = vrot.lane.b32.xlu0 %v512, 96
      %v844 = vpop.permute.xlu0 %843
      %845 = vrot.lane.b32.xlu0 %v517, 96
      %v846 = vpop.permute.xlu0 %845
      %847 = vrot.lane.b32.xlu0 %v522, 96
      %v848 = vpop.permute.xlu0 %847
      %849 = vrot.lane.b32.xlu0 %v527, 96
      %v850 = vpop.permute.xlu0 %849
      %851 = vrot.lane.b32.xlu0 %v532, 96
      %v852 = vpop.permute.xlu0 %851
      %853 = vrot.lane.b32.xlu0 %v537, 96
      %v854 = vpop.permute.xlu0 %853
      %855 = vrot.lane.b32.xlu0 %v542, 96
      %v856 = vpop.permute.xlu0 %855
      %857 = vrot.lane.b32.xlu0 %v547, 96
      %v858 = vpop.permute.xlu0 %857
      %859 = vrot.lane.b32.xlu0 %v552, 96
      %v860 = vpop.permute.xlu0 %859
      %861 = vrot.lane.b32.xlu0 %v557, 96
      %v862 = vpop.permute.xlu0 %861
      %863 = vrot.lane.b32.xlu0 %v562, 96
      %v864 = vpop.permute.xlu0 %863
      %865 = vrot.lane.b32.xlu0 %v567, 96
      %v866 = vpop.permute.xlu0 %865
      %883 = vmatprep.subr.mxu0 0.0
      %884 = vmatpush1.msra.mxu0 %v836
      %885 = vmatprep.subr.mxu0 0.0
      %886 = vmatpush1.msra.mxu0 %v838
      %887 = vmatprep.subr.mxu0 0.0
      %888 = vmatpush1.msra.mxu0 %v840
      %889 = vmatprep.subr.mxu0 0.0
      %890 = vmatpush1.msra.mxu0 %v842
      %891 = vmatprep.subr.mxu0 0.0
      %892 = vmatpush1.msra.mxu0 %v844
      %893 = vmatprep.subr.mxu0 0.0
      %894 = vmatpush1.msra.mxu0 %v846
      %895 = vmatprep.subr.mxu0 0.0
      %896 = vmatpush1.msra.mxu0 %v848
      %897 = vmatprep.subr.mxu0 0.0
      %898 = vmatpush1.msra.mxu0 %v850
      %899 = vmatprep.subr.mxu0 0.0
      %900 = vmatpush1.msra.mxu0 %v852
      %901 = vmatprep.subr.mxu0 0.0
      %902 = vmatpush1.msra.mxu0 %v854
      %903 = vmatprep.subr.mxu0 0.0
      %904 = vmatpush1.msra.mxu0 %v856
      %905 = vmatprep.subr.mxu0 0.0
      %906 = vmatpush1.msra.mxu0 %v858
      %907 = vmatprep.subr.mxu0 0.0
      %908 = vmatpush1.msra.mxu0 %v860
      %909 = vmatprep.subr.mxu0 0.0
      %910 = vmatpush1.msra.mxu0 %v862
      %911 = vmatprep.subr.mxu0 0.0
      %912 = vmatpush1.msra.mxu0 %v864
      %913 = vmatprep.subr.mxu0 0.0
      %914 = vmatpush1.msra.mxu0 %v866
      %915 = vmatprep.subr.mxu0 0.0
      %916 = vmatpush1.msra.mxu0 0.0
      %917 = vmatprep.subr.mxu0 0.0
      %918 = vmatpush1.msra.mxu0 0.0
      %919 = vmatprep.subr.mxu0 0.0
      %920 = vmatpush1.msra.mxu0 0.0
      %921 = vmatprep.subr.mxu0 0.0
      %922 = vmatpush1.msra.mxu0 0.0
      %923 = vmatprep.subr.mxu0 0.0
      %924 = vmatpush1.msra.mxu0 0.0
      %925 = vmatprep.subr.mxu0 0.0
      %926 = vmatpush1.msra.mxu0 0.0
      %927 = vmatprep.subr.mxu0 0.0
      %928 = vmatpush1.msra.mxu0 0.0
      %929 = vmatprep.subr.mxu0 0.0
      %930 = vmatpush1.msra.mxu0 0.0
      %931 = vmatprep.subr.mxu0 0.0
      %932 = vmatpush1.msra.mxu0 0.0
      %933 = vmatprep.subr.mxu0 0.0
      %934 = vmatpush1.msra.mxu0 0.0
      %935 = vmatprep.subr.mxu0 0.0
      %936 = vmatpush1.msra.mxu0 0.0
      %937 = vmatprep.subr.mxu0 0.0
      %938 = vmatpush1.msra.mxu0 0.0
      %939 = vmatprep.subr.mxu0 0.0
      %940 = vmatpush1.msra.mxu0 0.0
      %941 = vmatprep.subr.mxu0 0.0
      %942 = vmatpush1.msra.mxu0 0.0
      %943 = vmatprep.subr.mxu0 0.0
      %944 = vmatpush1.msra.mxu0 0.0
      %945 = vmatprep.subr.mxu0 0.0
      %946 = vmatpush1.msra.mxu0 0.0
      %947 = vmatprep.mubr.f32.mxu0 0.0
      %948 = vmatmul.mubr.f32.gmra.mrb[0].mxu0 %v827
      %v949 = vpop.f32.mrb[0].mxu0
      %v950 = vadd.f32 0.0, %v949
      %v951 = vpop.f32.mrb[0].mxu0
      %952 = vmatprep.mubr.f32.mxu0 0.0
      %953 = vmatmul.mubr.f32.gmra.mrb[0].mxu0 %v828
      %v954 = vpop.f32.mrb[0].mxu0
      %v955 = vadd.f32 0.0, %v954
      %v956 = vpop.f32.mrb[0].mxu0
      %957 = vmatprep.mubr.f32.mxu0 0.0
      %958 = vmatmul.mubr.f32.gmra.mrb[0].mxu0 %v829
      %v959 = vpop.f32.mrb[0].mxu0
      %v960 = vadd.f32 0.0, %v959
      %v961 = vpop.f32.mrb[0].mxu0
      %962 = vmatprep.mubr.f32.mxu0 0.0
      %963 = vmatmul.mubr.f32.gmra.mrb[0].mxu0 %v830
      %v964 = vpop.f32.mrb[0].mxu0
      %v965 = vadd.f32 0.0, %v964
      %v966 = vpop.f32.mrb[0].mxu0
      %967 = vmatprep.mubr.f32.mxu0 0.0
      %968 = vmatmul.mubr.f32.gmra.mrb[0].mxu0 %v831
      %v969 = vpop.f32.mrb[0].mxu0
      %v970 = vadd.f32 0.0, %v969
      %v971 = vpop.f32.mrb[0].mxu0
      %972 = vmatprep.mubr.f32.mxu0 0.0
      %973 = vmatmul.mubr.f32.gmra.mrb[0].mxu0 %v832
      %v974 = vpop.f32.mrb[0].mxu0
      %v975 = vadd.f32 0.0, %v974
      %v976 = vpop.f32.mrb[0].mxu0
      %977 = vmatprep.mubr.f32.mxu0 0.0
      %978 = vmatmul.mubr.f32.gmra.mrb[0].mxu0 %v833
      %v979 = vpop.f32.mrb[0].mxu0
      %v980 = vadd.f32 0.0, %v979
      %v981 = vpop.f32.mrb[0].mxu0
      %982 = vmatprep.mubr.f32.mxu0 0.0
      %983 = vmatmul.mubr.f32.gmra.mrb[0].mxu0 %v834
      %v984 = vpop.f32.mrb[0].mxu0
      %v985 = vadd.f32 0.0, %v984
      %v986 = vpop.f32.mrb[0].mxu0
      %987 = vdwg.mxu0
      %v988 = vld [vmem:[%s6] sm:$0xff]
      %v989 = vld [vmem:[%s6 + $0x8] sm:$0xff]
      %v990 = vld [vmem:[%s6 + $0x10] sm:$0xff]
      %v991 = vld [vmem:[%s6 + $0x18] sm:$0xff]
      %v992 = vld [vmem:[%s7] sm:$0x1]
      %v994 = vlaneseq
      %v995 = vshrl.u32 %v994, 7
      %v996 = vsub.s32 0, %v995
      %v997 = vrot.slane %v992, %v996
      %v1000 = vsel %vm376, %v950, 0
      %v1003 = vsel %vm376, %v955, 0
      %v1006 = vsel %vm376, %v960, 0
      %v1009 = vsel %vm376, %v965, 0
      %v1012 = vsel %vm376, %v970, 0
      %v1015 = vsel %vm376, %v975, 0
      %v1018 = vsel %vm376, %v980, 0
      %v1021 = vsel %vm376, %v985, 0
      %1023 = vmatprep.subr.mxu0 0.0
      %1024 = vmatpush1.msra.mxu0 %v988
      %1025 = vmatprep.subr.mxu0 0.0
      %1026 = vmatpush1.msra.mxu0 %v989
      %1027 = vmatprep.subr.mxu0 0.0
      %1028 = vmatpush1.msra.mxu0 %v990
      %1029 = vmatprep.subr.mxu0 0.0
      %1030 = vmatpush1.msra.mxu0 %v991
      %1031 = vmatprep.subr.mxu0 0.0
      %1032 = vmatpush1.msra.mxu0 0.0
      %1033 = vmatprep.subr.mxu0 0.0
      %1034 = vmatpush1.msra.mxu0 0.0
      %1035 = vmatprep.subr.mxu0 0.0
      %1036 = vmatpush1.msra.mxu0 0.0
      %1037 = vmatprep.subr.mxu0 0.0
      %1038 = vmatpush1.msra.mxu0 0.0
      %1039 = vmatprep.subr.mxu0 0.0
      %1040 = vmatpush1.msra.mxu0 0.0
      %1041 = vmatprep.subr.mxu0 0.0
      %1042 = vmatpush1.msra.mxu0 0.0
      %1043 = vmatprep.subr.mxu0 0.0
      %1044 = vmatpush1.msra.mxu0 0.0
      %1045 = vmatprep.subr.mxu0 0.0
      %1046 = vmatpush1.msra.mxu0 0.0
      %1047 = vmatprep.subr.mxu0 0.0
      %1048 = vmatpush1.msra.mxu0 0.0
      %1049 = vmatprep.subr.mxu0 0.0
      %1050 = vmatpush1.msra.mxu0 0.0
      %1051 = vmatprep.subr.mxu0 0.0
      %1052 = vmatpush1.msra.mxu0 0.0
      %1053 = vmatprep.subr.mxu0 0.0
      %1054 = vmatpush1.msra.mxu0 0.0
      %1055 = vmatprep.subr.mxu0 0.0
      %1056 = vmatpush1.msra.mxu0 0.0
      %1057 = vmatprep.subr.mxu0 0.0
      %1058 = vmatpush1.msra.mxu0 0.0
      %1059 = vmatprep.subr.mxu0 0.0
      %1060 = vmatpush1.msra.mxu0 0.0
      %1061 = vmatprep.subr.mxu0 0.0
      %1062 = vmatpush1.msra.mxu0 0.0
      %1063 = vmatprep.subr.mxu0 0.0
      %1064 = vmatpush1.msra.mxu0 0.0
      %1065 = vmatprep.subr.mxu0 0.0
      %1066 = vmatpush1.msra.mxu0 0.0
      %1067 = vmatprep.subr.mxu0 0.0
      %1068 = vmatpush1.msra.mxu0 0.0
      %1069 = vmatprep.subr.mxu0 0.0
      %1070 = vmatpush1.msra.mxu0 0.0
      %1071 = vmatprep.subr.mxu0 0.0
      %1072 = vmatpush1.msra.mxu0 0.0
      %1073 = vmatprep.subr.mxu0 0.0
      %1074 = vmatpush1.msra.mxu0 0.0
      %1075 = vmatprep.subr.mxu0 0.0
      %1076 = vmatpush1.msra.mxu0 0.0
      %1077 = vmatprep.subr.mxu0 0.0
      %1078 = vmatpush1.msra.mxu0 0.0
      %1079 = vmatprep.subr.mxu0 0.0
      %1080 = vmatpush1.msra.mxu0 0.0
      %1081 = vmatprep.subr.mxu0 0.0
      %1082 = vmatpush1.msra.mxu0 0.0
      %1083 = vmatprep.subr.mxu0 0.0
      %1084 = vmatpush1.msra.mxu0 0.0
      %1085 = vmatprep.subr.mxu0 0.0
      %1086 = vmatpush1.msra.mxu0 0.0
      %1087 = vmatprep.mubr.f32.mxu0 0.0
      %1088 = vmatmul.mubr.f32.gmra.mrb[0].mxu0 %v1000
      %v1089 = vpop.f32.mrb[0].mxu0
      %v1090 = vadd.f32 %v997, %v1089
      %v1091 = vpop.f32.mrb[0].mxu0
      %1092 = vmatprep.mubr.f32.mxu0 0.0
      %1093 = vmatmul.mubr.f32.gmra.mrb[0].mxu0 %v1003
      %v1094 = vpop.f32.mrb[0].mxu0
      %v1095 = vadd.f32 %v997, %v1094
      %v1096 = vpop.f32.mrb[0].mxu0
      %1097 = vmatprep.mubr.f32.mxu0 0.0
      %1098 = vmatmul.mubr.f32.gmra.mrb[0].mxu0 %v1006
      %v1099 = vpop.f32.mrb[0].mxu0
      %v1100 = vadd.f32 %v997, %v1099
      %v1101 = vpop.f32.mrb[0].mxu0
      %1102 = vmatprep.mubr.f32.mxu0 0.0
      %1103 = vmatmul.mubr.f32.gmra.mrb[0].mxu0 %v1009
      %v1104 = vpop.f32.mrb[0].mxu0
      %v1105 = vadd.f32 %v997, %v1104
      %v1106 = vpop.f32.mrb[0].mxu0
      %1107 = vmatprep.mubr.f32.mxu0 0.0
      %1108 = vmatmul.mubr.f32.gmra.mrb[0].mxu0 %v1012
      %v1109 = vpop.f32.mrb[0].mxu0
      %v1110 = vadd.f32 %v997, %v1109
      %v1111 = vpop.f32.mrb[0].mxu0
      %1112 = vmatprep.mubr.f32.mxu0 0.0
      %1113 = vmatmul.mubr.f32.gmra.mrb[0].mxu0 %v1015
      %v1114 = vpop.f32.mrb[0].mxu0
      %v1115 = vadd.f32 %v997, %v1114
      %v1116 = vpop.f32.mrb[0].mxu0
      %1117 = vmatprep.mubr.f32.mxu0 0.0
      %1118 = vmatmul.mubr.f32.gmra.mrb[0].mxu0 %v1018
      %v1119 = vpop.f32.mrb[0].mxu0
      %v1120 = vadd.f32 %v997, %v1119
      %v1121 = vpop.f32.mrb[0].mxu0
      %1122 = vmatprep.mubr.f32.mxu0 0.0
      %1123 = vmatmul.mubr.f32.gmra.mrb[0].mxu0 %v1021
      %v1124 = vpop.f32.mrb[0].mxu0
      %v1125 = vadd.f32 %v997, %v1124
      %v1126 = vpop.f32.mrb[0].mxu0
      %1127 = vdwg.mxu0
      %v1128 = vld [vmem:[%s3] sm:$0xff]
      %v1129 = vld [vmem:[%s3 + $0x8] sm:$0xff]
      %v1130 = vld [vmem:[%s3 + $0x10] sm:$0xff]
      %v1131 = vld [vmem:[%s3 + $0x18] sm:$0xff]
      %v1132 = vld [vmem:[%s3 + $0x20] sm:$0xff]
      %v1133 = vld [vmem:[%s3 + $0x28] sm:$0xff]
      %v1134 = vld [vmem:[%s3 + $0x30] sm:$0xff]
      %v1135 = vld [vmem:[%s3 + $0x38] sm:$0xff]
      %v1136 = vld [vmem:[%s3 + $0x40] sm:$0xff]
      %v1137 = vld [vmem:[%s3 + $0x48] sm:$0xff]
      %v1138 = vld [vmem:[%s3 + $0x50] sm:$0xff]
      %v1139 = vld [vmem:[%s3 + $0x58] sm:$0xff]
      %v1140 = vld [vmem:[%s3 + $0x60] sm:$0xff]
      %v1141 = vld [vmem:[%s3 + $0x68] sm:$0xff]
      %v1142 = vld [vmem:[%s3 + $0x70] sm:$0xff]
      %v1143 = vld [vmem:[%s3 + $0x78] sm:$0xff]
      %1144 = vrot.lane.b32.xlu0 %v492, 64
      %v1145 = vpop.permute.xlu0 %1144
      %1146 = vrot.lane.b32.xlu0 %v497, 64
      %v1147 = vpop.permute.xlu0 %1146
      %1148 = vrot.lane.b32.xlu0 %v502, 64
      %v1149 = vpop.permute.xlu0 %1148
      %1150 = vrot.lane.b32.xlu0 %v507, 64
      %v1151 = vpop.permute.xlu0 %1150
      %1152 = vrot.lane.b32.xlu0 %v512, 64
      %v1153 = vpop.permute.xlu0 %1152
      %1154 = vrot.lane.b32.xlu0 %v517, 64
      %v1155 = vpop.permute.xlu0 %1154
      %1156 = vrot.lane.b32.xlu0 %v522, 64
      %v1157 = vpop.permute.xlu0 %1156
      %1158 = vrot.lane.b32.xlu0 %v527, 64
      %v1159 = vpop.permute.xlu0 %1158
      %1160 = vrot.lane.b32.xlu0 %v532, 64
      %v1161 = vpop.permute.xlu0 %1160
      %1162 = vrot.lane.b32.xlu0 %v537, 64
      %v1163 = vpop.permute.xlu0 %1162
      %1164 = vrot.lane.b32.xlu0 %v542, 64
      %v1165 = vpop.permute.xlu0 %1164
      %1166 = vrot.lane.b32.xlu0 %v547, 64
      %v1167 = vpop.permute.xlu0 %1166
      %1168 = vrot.lane.b32.xlu0 %v552, 64
      %v1169 = vpop.permute.xlu0 %1168
      %1170 = vrot.lane.b32.xlu0 %v557, 64
      %v1171 = vpop.permute.xlu0 %1170
      %1172 = vrot.lane.b32.xlu0 %v562, 64
      %v1173 = vpop.permute.xlu0 %1172
      %1174 = vrot.lane.b32.xlu0 %v567, 64
      %v1175 = vpop.permute.xlu0 %1174
      %v1176 = vsel %vm376, %v1145, 0
      %v1178 = vsel %vm376, %v1147, 0
      %v1180 = vsel %vm376, %v1149, 0
      %v1182 = vsel %vm376, %v1151, 0
      %v1184 = vsel %vm376, %v1153, 0
      %v1186 = vsel %vm376, %v1155, 0
      %v1188 = vsel %vm376, %v1157, 0
      %v1190 = vsel %vm376, %v1159, 0
      %v1192 = vsel %vm376, %v1161, 0
      %v1194 = vsel %vm376, %v1163, 0
      %v1196 = vsel %vm376, %v1165, 0
      %v1198 = vsel %vm376, %v1167, 0
      %v1200 = vsel %vm376, %v1169, 0
      %v1202 = vsel %vm376, %v1171, 0
      %v1204 = vsel %vm376, %v1173, 0
      %v1206 = vsel %vm376, %v1175, 0
      %v1209 = vsel %vm376, %v1090, 0
      %v1212 = vsel %vm376, %v1095, 0
      %v1215 = vsel %vm376, %v1100, 0
      %v1218 = vsel %vm376, %v1105, 0
      %v1221 = vsel %vm376, %v1110, 0
      %v1224 = vsel %vm376, %v1115, 0
      %v1227 = vsel %vm376, %v1120, 0
      %v1230 = vsel %vm376, %v1125, 0
      %1232 = vmatprep.subr.mxu0 0.0
      %1233 = vmatpush1.xpose.msra.mxu0 %v1209
      %1234 = vmatprep.subr.mxu0 0.0
      %1235 = vmatpush1.xpose.msra.mxu0 %v1212
      %1236 = vmatprep.subr.mxu0 0.0
      %1237 = vmatpush1.xpose.msra.mxu0 %v1215
      %1238 = vmatprep.subr.mxu0 0.0
      %1239 = vmatpush1.xpose.msra.mxu0 %v1218
      %1240 = vmatprep.subr.mxu0 0.0
      %1241 = vmatpush1.xpose.msra.mxu0 %v1221
      %1242 = vmatprep.subr.mxu0 0.0
      %1243 = vmatpush1.xpose.msra.mxu0 %v1224
      %1244 = vmatprep.subr.mxu0 0.0
      %1245 = vmatpush1.xpose.msra.mxu0 %v1227
      %1246 = vmatprep.subr.mxu0 0.0
      %1247 = vmatpush1.xpose.msra.mxu0 %v1230
      %1248 = vmatprep.subr.mxu0 0.0
      %1249 = vmatpush1.xpose.msra.mxu0 0.0
      %1250 = vmatprep.subr.mxu0 0.0
      %1251 = vmatpush1.xpose.msra.mxu0 0.0
      %1252 = vmatprep.subr.mxu0 0.0
      %1253 = vmatpush1.xpose.msra.mxu0 0.0
      %1254 = vmatprep.subr.mxu0 0.0
      %1255 = vmatpush1.xpose.msra.mxu0 0.0
      %1256 = vmatprep.subr.mxu0 0.0
      %1257 = vmatpush1.xpose.msra.mxu0 0.0
      %1258 = vmatprep.subr.mxu0 0.0
      %1259 = vmatpush1.xpose.msra.mxu0 0.0
      %1260 = vmatprep.subr.mxu0 0.0
      %1261 = vmatpush1.xpose.msra.mxu0 0.0
      %1262 = vmatprep.subr.mxu0 0.0
      %1263 = vmatpush1.xpose.msra.mxu0 0.0
      %1264 = vmatprep.subr.mxu0 0.0
      %1265 = vmatpush1.xpose.msra.mxu0 0.0
      %1266 = vmatprep.subr.mxu0 0.0
      %1267 = vmatpush1.xpose.msra.mxu0 0.0
      %1268 = vmatprep.subr.mxu0 0.0
      %1269 = vmatpush1.xpose.msra.mxu0 0.0
      %1270 = vmatprep.subr.mxu0 0.0
      %1271 = vmatpush1.xpose.msra.mxu0 0.0
      %1272 = vmatprep.subr.mxu0 0.0
      %1273 = vmatpush1.xpose.msra.mxu0 0.0
      %1274 = vmatprep.subr.mxu0 0.0
      %1275 = vmatpush1.xpose.msra.mxu0 0.0
      %1276 = vmatprep.subr.mxu0 0.0
      %1277 = vmatpush1.xpose.msra.mxu0 0.0
      %1278 = vmatprep.subr.mxu0 0.0
      %1279 = vmatpush1.xpose.msra.mxu0 0.0
      %1280 = vmatprep.subr.mxu0 0.0
      %1281 = vmatpush1.xpose.msra.mxu0 0.0
      %1282 = vmatprep.subr.mxu0 0.0
      %1283 = vmatpush1.xpose.msra.mxu0 0.0
      %1284 = vmatprep.subr.mxu0 0.0
      %1285 = vmatpush1.xpose.msra.mxu0 0.0
      %1286 = vmatprep.subr.mxu0 0.0
      %1287 = vmatpush1.xpose.msra.mxu0 0.0
      %1288 = vmatprep.subr.mxu0 0.0
      %1289 = vmatpush1.xpose.msra.mxu0 0.0
      %1290 = vmatprep.subr.mxu0 0.0
      %1291 = vmatpush1.xpose.msra.mxu0 0.0
      %1292 = vmatprep.subr.mxu0 0.0
      %1293 = vmatpush1.xpose.msra.mxu0 0.0
      %1294 = vmatprep.subr.mxu0 0.0
      %1295 = vmatpush1.xpose.msra.mxu0 0.0
      %1296 = vmatprep.mubr.f32.mxu0 0.0
      %1297 = vmatmul.mubr.f32.gmra.mrb[0].mxu0 %v1176
      %v1298 = vpop.f32.mrb[0].mxu0
      %v1299 = vadd.f32 %v1128, %v1298
      %v1300 = vpop.f32.mrb[0].mxu0
      %1301 = vmatprep.mubr.f32.mxu0 0.0
      %1302 = vmatmul.mubr.f32.gmra.mrb[0].mxu0 %v1178
      %v1303 = vpop.f32.mrb[0].mxu0
      %v1304 = vadd.f32 %v1129, %v1303
      %v1305 = vpop.f32.mrb[0].mxu0
      %1306 = vmatprep.mubr.f32.mxu0 0.0
      %1307 = vmatmul.mubr.f32.gmra.mrb[0].mxu0 %v1180
      %v1308 = vpop.f32.mrb[0].mxu0
      %v1309 = vadd.f32 %v1130, %v1308
      %v1310 = vpop.f32.mrb[0].mxu0
      %1311 = vmatprep.mubr.f32.mxu0 0.0
      %1312 = vmatmul.mubr.f32.gmra.mrb[0].mxu0 %v1182
      %v1313 = vpop.f32.mrb[0].mxu0
      %v1314 = vadd.f32 %v1131, %v1313
      %v1315 = vpop.f32.mrb[0].mxu0
      %1316 = vmatprep.mubr.f32.mxu0 0.0
      %1317 = vmatmul.mubr.f32.gmra.mrb[0].mxu0 %v1184
      %v1318 = vpop.f32.mrb[0].mxu0
      %v1319 = vadd.f32 %v1132, %v1318
      %v1320 = vpop.f32.mrb[0].mxu0
      %1321 = vmatprep.mubr.f32.mxu0 0.0
      %1322 = vmatmul.mubr.f32.gmra.mrb[0].mxu0 %v1186
      %v1323 = vpop.f32.mrb[0].mxu0
      %v1324 = vadd.f32 %v1133, %v1323
      %v1325 = vpop.f32.mrb[0].mxu0
      %1326 = vmatprep.mubr.f32.mxu0 0.0
      %1327 = vmatmul.mubr.f32.gmra.mrb[0].mxu0 %v1188
      %v1328 = vpop.f32.mrb[0].mxu0
      %v1329 = vadd.f32 %v1134, %v1328
      %v1330 = vpop.f32.mrb[0].mxu0
      %1331 = vmatprep.mubr.f32.mxu0 0.0
      %1332 = vmatmul.mubr.f32.gmra.mrb[0].mxu0 %v1190
      %v1333 = vpop.f32.mrb[0].mxu0
      %v1334 = vadd.f32 %v1135, %v1333
      %v1335 = vpop.f32.mrb[0].mxu0
      %1336 = vmatprep.mubr.f32.mxu0 0.0
      %1337 = vmatmul.mubr.f32.gmra.mrb[0].mxu0 %v1192
      %v1338 = vpop.f32.mrb[0].mxu0
      %v1339 = vadd.f32 %v1136, %v1338
      %v1340 = vpop.f32.mrb[0].mxu0
      %1341 = vmatprep.mubr.f32.mxu0 0.0
      %1342 = vmatmul.mubr.f32.gmra.mrb[0].mxu0 %v1194
      %v1343 = vpop.f32.mrb[0].mxu0
      %v1344 = vadd.f32 %v1137, %v1343
      %v1345 = vpop.f32.mrb[0].mxu0
      %1346 = vmatprep.mubr.f32.mxu0 0.0
      %1347 = vmatmul.mubr.f32.gmra.mrb[0].mxu0 %v1196
      %v1348 = vpop.f32.mrb[0].mxu0
      %v1349 = vadd.f32 %v1138, %v1348
      %v1350 = vpop.f32.mrb[0].mxu0
      %1351 = vmatprep.mubr.f32.mxu0 0.0
      %1352 = vmatmul.mubr.f32.gmra.mrb[0].mxu0 %v1198
      %v1353 = vpop.f32.mrb[0].mxu0
      %v1354 = vadd.f32 %v1139, %v1353
      %v1355 = vpop.f32.mrb[0].mxu0
      %1356 = vmatprep.mubr.f32.mxu0 0.0
      %1357 = vmatmul.mubr.f32.gmra.mrb[0].mxu0 %v1200
      %v1358 = vpop.f32.mrb[0].mxu0
      %v1359 = vadd.f32 %v1140, %v1358
      %v1360 = vpop.f32.mrb[0].mxu0
      %1361 = vmatprep.mubr.f32.mxu0 0.0
      %1362 = vmatmul.mubr.f32.gmra.mrb[0].mxu0 %v1202
      %v1363 = vpop.f32.mrb[0].mxu0
      %v1364 = vadd.f32 %v1141, %v1363
      %v1365 = vpop.f32.mrb[0].mxu0
      %1366 = vmatprep.mubr.f32.mxu0 0.0
      %1367 = vmatmul.mubr.f32.gmra.mrb[0].mxu0 %v1204
      %v1368 = vpop.f32.mrb[0].mxu0
      %v1369 = vadd.f32 %v1142, %v1368
      %v1370 = vpop.f32.mrb[0].mxu0
      %1371 = vmatprep.mubr.f32.mxu0 0.0
      %1372 = vmatmul.mubr.f32.gmra.mrb[0].mxu0 %v1206
      %v1373 = vpop.f32.mrb[0].mxu0
      %v1374 = vadd.f32 %v1143, %v1373
      %v1375 = vpop.f32.mrb[0].mxu0
      %1376 = vdwg.mxu0
      %vm1377 = vcmask 523264
      %v1378 = vsel %vm1377, %v1299, -inf
      %1379 = vmax.xlane.f32.xlu0 %v1378
      %v1380 = vpop.xlane.xlu0 %1379
      %v1381 = vsel %vm1377, %v1304, -inf
      %1382 = vmax.xlane.f32.xlu0 %v1381
      %v1383 = vpop.xlane.xlu0 %1382
      %v1384 = vsel %vm1377, %v1309, -inf
      %1385 = vmax.xlane.f32.xlu0 %v1384
      %v1386 = vpop.xlane.xlu0 %1385
      %v1387 = vsel %vm1377, %v1314, -inf
      %1388 = vmax.xlane.f32.xlu0 %v1387
      %v1389 = vpop.xlane.xlu0 %1388
      %v1390 = vsel %vm1377, %v1319, -inf
      %1391 = vmax.xlane.f32.xlu0 %v1390
      %v1392 = vpop.xlane.xlu0 %1391
      %v1393 = vsel %vm1377, %v1324, -inf
      %1394 = vmax.xlane.f32.xlu0 %v1393
      %v1395 = vpop.xlane.xlu0 %1394
      %v1396 = vsel %vm1377, %v1329, -inf
      %1397 = vmax.xlane.f32.xlu0 %v1396
      %v1398 = vpop.xlane.xlu0 %1397
      %v1399 = vsel %vm1377, %v1334, -inf
      %1400 = vmax.xlane.f32.xlu0 %v1399
      %v1401 = vpop.xlane.xlu0 %1400
      %v1402 = vsel %vm1377, %v1339, -inf
      %1403 = vmax.xlane.f32.xlu0 %v1402
      %v1404 = vpop.xlane.xlu0 %1403
      %v1405 = vsel %vm1377, %v1344, -inf
      %1406 = vmax.xlane.f32.xlu0 %v1405
      %v1407 = vpop.xlane.xlu0 %1406
      %v1408 = vsel %vm1377, %v1349, -inf
      %1409 = vmax.xlane.f32.xlu0 %v1408
      %v1410 = vpop.xlane.xlu0 %1409
      %v1411 = vsel %vm1377, %v1354, -inf
      %1412 = vmax.xlane.f32.xlu0 %v1411
      %v1413 = vpop.xlane.xlu0 %1412
      %v1414 = vsel %vm1377, %v1359, -inf
      %1415 = vmax.xlane.f32.xlu0 %v1414
      %v1416 = vpop.xlane.xlu0 %1415
      %v1417 = vsel %vm1377, %v1364, -inf
      %1418 = vmax.xlane.f32.xlu0 %v1417
      %v1419 = vpop.xlane.xlu0 %1418
      %v1420 = vsel %vm1377, %v1369, -inf
      %1421 = vmax.xlane.f32.xlu0 %v1420
      %v1422 = vpop.xlane.xlu0 %1421
      %v1423 = vsel %vm1377, %v1374, -inf
      %1424 = vmax.xlane.f32.xlu0 %v1423
      %v1425 = vpop.xlane.xlu0 %1424
      %v1426 = vsub.f32 %v1299, %v1380
      %v1427 = vsub.f32 %v1304, %v1383
      %v1428 = vsub.f32 %v1309, %v1386
      %v1429 = vsub.f32 %v1314, %v1389
      %v1430 = vsub.f32 %v1319, %v1392
      %v1431 = vsub.f32 %v1324, %v1395
      %v1432 = vsub.f32 %v1329, %v1398
      %v1433 = vsub.f32 %v1334, %v1401
      %v1434 = vsub.f32 %v1339, %v1404
      %v1435 = vsub.f32 %v1344, %v1407
      %v1436 = vsub.f32 %v1349, %v1410
      %v1437 = vsub.f32 %v1354, %v1413
      %v1438 = vsub.f32 %v1359, %v1416
      %v1439 = vsub.f32 %v1364, %v1419
      %v1440 = vsub.f32 %v1369, %v1422
      %v1441 = vsub.f32 %v1374, %v1425
      %v1442 = vmul.f32 %v1426, 1.442695
      %v1443 = vpow.pop %v1442
      %v1444 = vmul.f32 %v1427, 1.442695
      %v1445 = vpow.pop %v1444
      %v1446 = vmul.f32 %v1428, 1.442695
      %v1447 = vpow.pop %v1446
      %v1448 = vmul.f32 %v1429, 1.442695
      %v1449 = vpow.pop %v1448
      %v1450 = vmul.f32 %v1430, 1.442695
      %v1451 = vpow.pop %v1450
      %v1452 = vmul.f32 %v1431, 1.442695
      %v1453 = vpow.pop %v1452
      %v1454 = vmul.f32 %v1432, 1.442695
      %v1455 = vpow.pop %v1454
      %v1456 = vmul.f32 %v1433, 1.442695
      %v1457 = vpow.pop %v1456
      %v1458 = vmul.f32 %v1434, 1.442695
      %v1459 = vpow.pop %v1458
      %v1460 = vmul.f32 %v1435, 1.442695
      %v1461 = vpow.pop %v1460
      %v1462 = vmul.f32 %v1436, 1.442695
      %v1463 = vpow.pop %v1462
      %v1464 = vmul.f32 %v1437, 1.442695
      %v1465 = vpow.pop %v1464
      %v1466 = vmul.f32 %v1438, 1.442695
      %v1467 = vpow.pop %v1466
      %v1468 = vmul.f32 %v1439, 1.442695
      %v1469 = vpow.pop %v1468
      %v1470 = vmul.f32 %v1440, 1.442695
      %v1471 = vpow.pop %v1470
      %v1472 = vmul.f32 %v1441, 1.442695
      %v1473 = vpow.pop %v1472
      %v1474 = vsel %vm1377, %v1443, 0.0
      %1475 = vadd.xlane.f32.xlu0 %v1474
      %v1476 = vpop.xlane.xlu0 %1475
      %v1477 = vsel %vm1377, %v1445, 0.0
      %1478 = vadd.xlane.f32.xlu0 %v1477
      %v1479 = vpop.xlane.xlu0 %1478
      %v1480 = vsel %vm1377, %v1447, 0.0
      %1481 = vadd.xlane.f32.xlu0 %v1480
      %v1482 = vpop.xlane.xlu0 %1481
      %v1483 = vsel %vm1377, %v1449, 0.0
      %1484 = vadd.xlane.f32.xlu0 %v1483
      %v1485 = vpop.xlane.xlu0 %1484
      %v1486 = vsel %vm1377, %v1451, 0.0
      %1487 = vadd.xlane.f32.xlu0 %v1486
      %v1488 = vpop.xlane.xlu0 %1487
      %v1489 = vsel %vm1377, %v1453, 0.0
      %1490 = vadd.xlane.f32.xlu0 %v1489
      %v1491 = vpop.xlane.xlu0 %1490
      %v1492 = vsel %vm1377, %v1455, 0.0
      %1493 = vadd.xlane.f32.xlu0 %v1492
      %v1494 = vpop.xlane.xlu0 %1493
      %v1495 = vsel %vm1377, %v1457, 0.0
      %1496 = vadd.xlane.f32.xlu0 %v1495
      %v1497 = vpop.xlane.xlu0 %1496
      %v1498 = vsel %vm1377, %v1459, 0.0
      %1499 = vadd.xlane.f32.xlu0 %v1498
      %v1500 = vpop.xlane.xlu0 %1499
      %v1501 = vsel %vm1377, %v1461, 0.0
      %1502 = vadd.xlane.f32.xlu0 %v1501
      %v1503 = vpop.xlane.xlu0 %1502
      %v1504 = vsel %vm1377, %v1463, 0.0
      %1505 = vadd.xlane.f32.xlu0 %v1504
      %v1506 = vpop.xlane.xlu0 %1505
      %v1507 = vsel %vm1377, %v1465, 0.0
      %1508 = vadd.xlane.f32.xlu0 %v1507
      %v1509 = vpop.xlane.xlu0 %1508
      %v1510 = vsel %vm1377, %v1467, 0.0
      %1511 = vadd.xlane.f32.xlu0 %v1510
      %v1512 = vpop.xlane.xlu0 %1511
      %v1513 = vsel %vm1377, %v1469, 0.0
      %1514 = vadd.xlane.f32.xlu0 %v1513
      %v1515 = vpop.xlane.xlu0 %1514
      %v1516 = vsel %vm1377, %v1471, 0.0
      %1517 = vadd.xlane.f32.xlu0 %v1516
      %v1518 = vpop.xlane.xlu0 %1517
      %v1519 = vsel %vm1377, %v1473, 0.0
      %1520 = vadd.xlane.f32.xlu0 %v1519
      %v1521 = vpop.xlane.xlu0 %1520
      %v1522 = vrcp.pop %v1476
      %v1523 = vrcp.pop %v1479
      %v1524 = vrcp.pop %v1482
      %v1525 = vrcp.pop %v1485
      %v1526 = vrcp.pop %v1488
      %v1527 = vrcp.pop %v1491
      %v1528 = vrcp.pop %v1494
      %v1529 = vrcp.pop %v1497
      %v1530 = vrcp.pop %v1500
      %v1531 = vrcp.pop %v1503
      %v1532 = vrcp.pop %v1506
      %v1533 = vrcp.pop %v1509
      %v1534 = vrcp.pop %v1512
      %v1535 = vrcp.pop %v1515
      %v1536 = vrcp.pop %v1518
      %v1537 = vrcp.pop %v1521
      %v1538 = vmul.f32 %v1443, %v1522
      %v1539 = vmul.f32 %v1445, %v1523
      %v1540 = vmul.f32 %v1447, %v1524
      %v1541 = vmul.f32 %v1449, %v1525
      %v1542 = vmul.f32 %v1451, %v1526
      %v1543 = vmul.f32 %v1453, %v1527
      %v1544 = vmul.f32 %v1455, %v1528
      %v1545 = vmul.f32 %v1457, %v1529
      %v1546 = vmul.f32 %v1459, %v1530
      %v1547 = vmul.f32 %v1461, %v1531
      %v1548 = vmul.f32 %v1463, %v1532
      %v1549 = vmul.f32 %v1465, %v1533
      %v1550 = vmul.f32 %v1467, %v1534
      %v1551 = vmul.f32 %v1469, %v1535
      %v1552 = vmul.f32 %v1471, %v1536
      %v1553 = vmul.f32 %v1473, %v1537
      %1554 = vrot.lane.b32.xlu0 %v1090, 96
      %v1555 = vpop.permute.xlu0 %1554
      %1556 = vrot.lane.b32.xlu0 %v1095, 96
      %v1557 = vpop.permute.xlu0 %1556
      %1558 = vrot.lane.b32.xlu0 %v1100, 96
      %v1559 = vpop.permute.xlu0 %1558
      %1560 = vrot.lane.b32.xlu0 %v1105, 96
      %v1561 = vpop.permute.xlu0 %1560
      %1562 = vrot.lane.b32.xlu0 %v1110, 96
      %v1563 = vpop.permute.xlu0 %1562
      %1564 = vrot.lane.b32.xlu0 %v1115, 96
      %v1565 = vpop.permute.xlu0 %1564
      %1566 = vrot.lane.b32.xlu0 %v1120, 96
      %v1567 = vpop.permute.xlu0 %1566
      %1568 = vrot.lane.b32.xlu0 %v1125, 96
      %v1569 = vpop.permute.xlu0 %1568
      %v1579 = vsel %vm1377, %v1538, 0
      %v1582 = vsel %vm1377, %v1539, 0
      %v1585 = vsel %vm1377, %v1540, 0
      %v1588 = vsel %vm1377, %v1541, 0
      %v1591 = vsel %vm1377, %v1542, 0
      %v1594 = vsel %vm1377, %v1543, 0
      %v1597 = vsel %vm1377, %v1544, 0
      %v1600 = vsel %vm1377, %v1545, 0
      %v1603 = vsel %vm1377, %v1546, 0
      %v1606 = vsel %vm1377, %v1547, 0
      %v1609 = vsel %vm1377, %v1548, 0
      %v1612 = vsel %vm1377, %v1549, 0
      %v1615 = vsel %vm1377, %v1550, 0
      %v1618 = vsel %vm1377, %v1551, 0
      %v1621 = vsel %vm1377, %v1552, 0
      %v1624 = vsel %vm1377, %v1553, 0
      %1626 = vmatprep.subr.mxu0 0.0
      %1627 = vmatpush1.msra.mxu0 %v1555
      %1628 = vmatprep.subr.mxu0 0.0
      %1629 = vmatpush1.msra.mxu0 %v1557
      %1630 = vmatprep.subr.mxu0 0.0
      %1631 = vmatpush1.msra.mxu0 %v1559
      %1632 = vmatprep.subr.mxu0 0.0
      %1633 = vmatpush1.msra.mxu0 %v1561
      %1634 = vmatprep.subr.mxu0 0.0
      %1635 = vmatpush1.msra.mxu0 %v1563
      %1636 = vmatprep.subr.mxu0 0.0
      %1637 = vmatpush1.msra.mxu0 %v1565
      %1638 = vmatprep.subr.mxu0 0.0
      %1639 = vmatpush1.msra.mxu0 %v1567
      %1640 = vmatprep.subr.mxu0 0.0
      %1641 = vmatpush1.msra.mxu0 %v1569
      %1642 = vmatprep.subr.mxu0 0.0
      %1643 = vmatpush1.msra.mxu0 0.0
      %1644 = vmatprep.subr.mxu0 0.0
      %1645 = vmatpush1.msra.mxu0 0.0
      %1646 = vmatprep.subr.mxu0 0.0
      %1647 = vmatpush1.msra.mxu0 0.0
      %1648 = vmatprep.subr.mxu0 0.0
      %1649 = vmatpush1.msra.mxu0 0.0
      %1650 = vmatprep.subr.mxu0 0.0
      %1651 = vmatpush1.msra.mxu0 0.0
      %1652 = vmatprep.subr.mxu0 0.0
      %1653 = vmatpush1.msra.mxu0 0.0
      %1654 = vmatprep.subr.mxu0 0.0
      %1655 = vmatpush1.msra.mxu0 0.0
      %1656 = vmatprep.subr.mxu0 0.0
      %1657 = vmatpush1.msra.mxu0 0.0
      %1658 = vmatprep.subr.mxu0 0.0
      %1659 = vmatpush1.msra.mxu0 0.0
      %1660 = vmatprep.subr.mxu0 0.0
      %1661 = vmatpush1.msra.mxu0 0.0
      %1662 = vmatprep.subr.mxu0 0.0
      %1663 = vmatpush1.msra.mxu0 0.0
      %1664 = vmatprep.subr.mxu0 0.0
      %1665 = vmatpush1.msra.mxu0 0.0
      %1666 = vmatprep.subr.mxu0 0.0
      %1667 = vmatpush1.msra.mxu0 0.0
      %1668 = vmatprep.subr.mxu0 0.0
      %1669 = vmatpush1.msra.mxu0 0.0
      %1670 = vmatprep.subr.mxu0 0.0
      %1671 = vmatpush1.msra.mxu0 0.0
      %1672 = vmatprep.subr.mxu0 0.0
      %1673 = vmatpush1.msra.mxu0 0.0
      %1674 = vmatprep.subr.mxu0 0.0
      %1675 = vmatpush1.msra.mxu0 0.0
      %1676 = vmatprep.subr.mxu0 0.0
      %1677 = vmatpush1.msra.mxu0 0.0
      %1678 = vmatprep.subr.mxu0 0.0
      %1679 = vmatpush1.msra.mxu0 0.0
      %1680 = vmatprep.subr.mxu0 0.0
      %1681 = vmatpush1.msra.mxu0 0.0
      %1682 = vmatprep.subr.mxu0 0.0
      %1683 = vmatpush1.msra.mxu0 0.0
      %1684 = vmatprep.subr.mxu0 0.0
      %1685 = vmatpush1.msra.mxu0 0.0
      %1686 = vmatprep.subr.mxu0 0.0
      %1687 = vmatpush1.msra.mxu0 0.0
      %1688 = vmatprep.subr.mxu0 0.0
      %1689 = vmatpush1.msra.mxu0 0.0
      %1690 = vmatprep.mubr.f32.mxu0 0.0
      %1691 = vmatmul.mubr.f32.gmra.mrb[0].mxu0 %v1579
      %v1692 = vpop.f32.mrb[0].mxu0
      %v1693 = vadd.f32 0.0, %v1692
      %v1694 = vpop.f32.mrb[0].mxu0
      %1695 = vmatprep.mubr.f32.mxu0 0.0
      %1696 = vmatmul.mubr.f32.gmra.mrb[0].mxu0 %v1582
      %v1697 = vpop.f32.mrb[0].mxu0
      %v1698 = vadd.f32 0.0, %v1697
      %v1699 = vpop.f32.mrb[0].mxu0
      %1700 = vmatprep.mubr.f32.mxu0 0.0
      %1701 = vmatmul.mubr.f32.gmra.mrb[0].mxu0 %v1585
      %v1702 = vpop.f32.mrb[0].mxu0
      %v1703 = vadd.f32 0.0, %v1702
      %v1704 = vpop.f32.mrb[0].mxu0
      %1705 = vmatprep.mubr.f32.mxu0 0.0
      %1706 = vmatmul.mubr.f32.gmra.mrb[0].mxu0 %v1588
      %v1707 = vpop.f32.mrb[0].mxu0
      %v1708 = vadd.f32 0.0, %v1707
      %v1709 = vpop.f32.mrb[0].mxu0
      %1710 = vmatprep.mubr.f32.mxu0 0.0
      %1711 = vmatmul.mubr.f32.gmra.mrb[0].mxu0 %v1591
      %v1712 = vpop.f32.mrb[0].mxu0
      %v1713 = vadd.f32 0.0, %v1712
      %v1714 = vpop.f32.mrb[0].mxu0
      %1715 = vmatprep.mubr.f32.mxu0 0.0
      %1716 = vmatmul.mubr.f32.gmra.mrb[0].mxu0 %v1594
      %v1717 = vpop.f32.mrb[0].mxu0
      %v1718 = vadd.f32 0.0, %v1717
      %v1719 = vpop.f32.mrb[0].mxu0
      %1720 = vmatprep.mubr.f32.mxu0 0.0
      %1721 = vmatmul.mubr.f32.gmra.mrb[0].mxu0 %v1597
      %v1722 = vpop.f32.mrb[0].mxu0
      %v1723 = vadd.f32 0.0, %v1722
      %v1724 = vpop.f32.mrb[0].mxu0
      %1725 = vmatprep.mubr.f32.mxu0 0.0
      %1726 = vmatmul.mubr.f32.gmra.mrb[0].mxu0 %v1600
      %v1727 = vpop.f32.mrb[0].mxu0
      %v1728 = vadd.f32 0.0, %v1727
      %v1729 = vpop.f32.mrb[0].mxu0
      %1730 = vmatprep.mubr.f32.mxu0 0.0
      %1731 = vmatmul.mubr.f32.gmra.mrb[0].mxu0 %v1603
      %v1732 = vpop.f32.mrb[0].mxu0
      %v1733 = vadd.f32 0.0, %v1732
      %v1734 = vpop.f32.mrb[0].mxu0
      %1735 = vmatprep.mubr.f32.mxu0 0.0
      %1736 = vmatmul.mubr.f32.gmra.mrb[0].mxu0 %v1606
      %v1737 = vpop.f32.mrb[0].mxu0
      %v1738 = vadd.f32 0.0, %v1737
      %v1739 = vpop.f32.mrb[0].mxu0
      %1740 = vmatprep.mubr.f32.mxu0 0.0
      %1741 = vmatmul.mubr.f32.gmra.mrb[0].mxu0 %v1609
      %v1742 = vpop.f32.mrb[0].mxu0
      %v1743 = vadd.f32 0.0, %v1742
      %v1744 = vpop.f32.mrb[0].mxu0
      %1745 = vmatprep.mubr.f32.mxu0 0.0
      %1746 = vmatmul.mubr.f32.gmra.mrb[0].mxu0 %v1612
      %v1747 = vpop.f32.mrb[0].mxu0
      %v1748 = vadd.f32 0.0, %v1747
      %v1749 = vpop.f32.mrb[0].mxu0
      %1750 = vmatprep.mubr.f32.mxu0 0.0
      %1751 = vmatmul.mubr.f32.gmra.mrb[0].mxu0 %v1615
      %v1752 = vpop.f32.mrb[0].mxu0
      %v1753 = vadd.f32 0.0, %v1752
      %v1754 = vpop.f32.mrb[0].mxu0
      %1755 = vmatprep.mubr.f32.mxu0 0.0
      %1756 = vmatmul.mubr.f32.gmra.mrb[0].mxu0 %v1618
      %v1757 = vpop.f32.mrb[0].mxu0
      %v1758 = vadd.f32 0.0, %v1757
      %v1759 = vpop.f32.mrb[0].mxu0
      %1760 = vmatprep.mubr.f32.mxu0 0.0
      %1761 = vmatmul.mubr.f32.gmra.mrb[0].mxu0 %v1621
      %v1762 = vpop.f32.mrb[0].mxu0
      %v1763 = vadd.f32 0.0, %v1762
      %v1764 = vpop.f32.mrb[0].mxu0
      %1765 = vmatprep.mubr.f32.mxu0 0.0
      %1766 = vmatmul.mubr.f32.gmra.mrb[0].mxu0 %v1624
      %v1767 = vpop.f32.mrb[0].mxu0
      %v1768 = vadd.f32 0.0, %v1767
      %v1769 = vpop.f32.mrb[0].mxu0
      %1770 = vdwg.mxu0
      %1771 = vst.msk [vmem:[%s347] sm:$0xff] %vm376, %v1693
      %1772 = vst.msk [vmem:[%s347 + $0x8] sm:$0xff] %vm376, %v1698
      %1773 = vst.msk [vmem:[%s347 + $0x10] sm:$0xff] %vm376, %v1703
      %1774 = vst.msk [vmem:[%s347 + $0x18] sm:$0xff] %vm376, %v1708
      %1775 = vst.msk [vmem:[%s347 + $0x20] sm:$0xff] %vm376, %v1713
      %1776 = vst.msk [vmem:[%s347 + $0x28] sm:$0xff] %vm376, %v1718
      %1777 = vst.msk [vmem:[%s347 + $0x30] sm:$0xff] %vm376, %v1723
      %1778 = vst.msk [vmem:[%s347 + $0x38] sm:$0xff] %vm376, %v1728
      %1779 = vst.msk [vmem:[%s347 + $0x40] sm:$0xff] %vm376, %v1733
      %1780 = vst.msk [vmem:[%s347 + $0x48] sm:$0xff] %vm376, %v1738
      %1781 = vst.msk [vmem:[%s347 + $0x50] sm:$0xff] %vm376, %v1743
      %1782 = vst.msk [vmem:[%s347 + $0x58] sm:$0xff] %vm376, %v1748
      %1783 = vst.msk [vmem:[%s347 + $0x60] sm:$0xff] %vm376, %v1753
      %1784 = vst.msk [vmem:[%s347 + $0x68] sm:$0xff] %vm376, %v1758
      %1785 = vst.msk [vmem:[%s347 + $0x70] sm:$0xff] %vm376, %v1763
      %1786 = vst.msk [vmem:[%s347 + $0x78] sm:$0xff] %vm376, %v1768
      %s1787 = smul.u32 16, %s19
      %p1788 = scmp.lt.s32.totalorder %s1787, 31
      %s1789 = scalar_select %p1788, %s1787, 31
      %s1790 = smul.addr %s1789, 8
      %s1791 = scalar_lea.vmem %s8, %s1790
      // Predicated region
      $region53: #{tpu_custom_call.1} parent=51 // pred_check
        %p1792 = pneg %p220
      $region54: #{tpu_custom_call.1} parent=51 // pred_check_branch
        %1794 = sbr.rel (%p1792) target = $region56
      $region55: #{tpu_custom_call.1} parent=51 // pred_region
        %s1795 = smul.u32 16, %s19
      $region56: #{tpu_custom_call.1} parent=51 // pred_fallthru
        _
    $region52: #{tpu_custom_call.1} parent=5 // pred_fallthru
      _
    %p1796 = scmp.le.s32.totalorder 2, %s14
    // Predicated region
    $region57: #{tpu_custom_call.1} parent=5 // pred_check
      %p1797 = pneg %p1796
    $region58: #{tpu_custom_call.1} parent=5 // pred_check_branch
      %1799 = sbr.rel (%p1797) target = $region60
    $region59: #{tpu_custom_call.1} parent=5 // pred_region
      %s1800 = ssub.s32 %s14, 2
      // Predicated region
      $region61: #{tpu_custom_call.1} parent=59 // pred_check
        %p1801 = pneg %p226
      $region62: #{tpu_custom_call.1} parent=59 // pred_check_branch
        %1803 = sbr.rel (%p1801) target = $region64
      $region63: #{tpu_custom_call.1} parent=59 // pred_region
        %s1804 = smul.u32 16, %s20
        %p1805 = scmp.lt.s32.totalorder %s1804, 31
        %s1806 = scalar_select %p1805, %s1804, 31
        %s1807 = smul.addr %s1806, 8
        %s1808 = scalar_lea.vmem %s8, %s1807
      $region64: #{tpu_custom_call.1} parent=59 // pred_fallthru
        _
    $region60: #{tpu_custom_call.1} parent=5 // pred_fallthru
      _
  $region6: #{tpu_custom_call.1} parent=0 // loop_footer
    %s18 = sadd.s32 1, %s14
  $region7: #{tpu_custom_call.1} parent=0 // loop_footer_branch
    %13 = sbr.rel target = $region3
  $region8: #{tpu_custom_call.1} parent=0 // loop_exit
    _

</llo_original>
